<compile_context>
chip_gen: v6e
topology: v6e:2x2x1
jax: 0.10.0
libtpu: 0.0.40
codegen_flags: <defaults>
</compile_context>

<pallas_src>
import math
import functools

import jax
import jax.numpy as jnp
from jax.experimental import pallas as pl
from jax.experimental.pallas import tpu as pltpu

# ---------------- small config consistent with the module ----------------
BATCH = 2
SEQ = 8
HIDDEN = 32
NUM_HEADS = 4
HEAD_DIM = HIDDEN // NUM_HEADS      # 8
EPS = 1e-6
ROPE_THETA = 10000.0
# attention_dropout = 0.0 in eval mode -> no-op (not implemented in-kernel)


# ---------------- Pallas kernel ----------------
def _attn_kernel(x_ref, wqkv_ref, wo_ref, cos_ref, sin_ref, qnw_ref, knw_ref,
                 bias_ref, qmask_ref, out_ref, *, num_heads, head_dim, eps):
    BS, H = x_ref.shape            # (batch*seq, hidden)
    half = head_dim // 2

    x = x_ref[...]                                                     # (BS, H)

    # Fused Q/K/V projection: one MXU pass instead of three.
    qkv = jnp.dot(x, wqkv_ref[...], preferred_element_type=jnp.float32)  # (BS, 3H)
    q = qkv[:, :H].reshape(BS, num_heads, head_dim)
    k = qkv[:, H:2 * H].reshape(BS, num_heads, head_dim)
    v = qkv[:, 2 * H:].reshape(BS, num_heads, head_dim)

    cos = cos_ref[...][:, None, :]   # (BS, 1, D) -- broadcast over heads (hoisted)
    sin = sin_ref[...][:, None, :]

    def rmsnorm_rope(t, w_ref):
        # Per-head RMSNorm over head_dim followed by RoPE, applied to ALL heads
        # of the full (BS, nh, D) tensor at once (no per-head slicing).
        var = jnp.mean(t * t, axis=-1, keepdims=True)                  # (BS, nh, 1)
        tn = t * jax.lax.rsqrt(var + eps) * w_ref[...][None]           # (BS, nh, D)
        rot = jnp.concatenate([-tn[..., half:], tn[..., :half]], axis=-1)
        return tn * cos + rot * sin

    # 1/sqrt(head_dim) softmax scale is pre-folded into the q-norm weight.
    qe = rmsnorm_rope(q, qnw_ref)
    ke = rmsnorm_rope(k, knw_ref)

    # (BS, nh, D) -> (nh, BS, D): heads become the leading matmul batch dim.
    qh = pltpu.einshape("shd->hsd", qe)
    kh = pltpu.einshape("shd->hsd", ke)
    vh = pltpu.einshape("shd->hsd", v)

    # One batched NT matmul over the flattened (batch*seq) key axis.  Cross-batch
    # and padded-key entries are knocked out by the additive bias (finfo.min).
    s = jnp.einsum('hqd,hkd->hqk', qh, kh,
                   preferred_element_type=jnp.float32)                 # (nh, BS, BS)
    s = s + bias_ref[...][None]

    # Softmax in float32; denominator reciprocal on the EUP (free slot).
    m = jnp.max(s, axis=-1, keepdims=True)
    e = jnp.exp(s - m)
    l = jnp.sum(e, axis=-1, keepdims=True)
    p = e * pl.reciprocal(l, approx=True)

    # One batched NN matmul for P @ V.
    ctx = jnp.einsum('hqk,hkd->hqd', p, vh,
                     preferred_element_type=jnp.float32)               # (nh, BS, D)
    ctx = pltpu.einshape("hsd->shd", ctx).reshape(BS, H)               # (BS, H)

    o = jnp.dot(ctx, wo_ref[...], preferred_element_type=jnp.float32)  # (BS, H)

    # Flash-attention unpadding semantics: fully padded query rows produce zeros.
    out_ref[...] = o * qmask_ref[...]


# ---------------- wrapper ----------------
def llama_flash_attention2_pallas(x, wq, wk, wv, wo, norm_q_w, norm_k_w,
                                  cos, sin, attention_mask):
    """x: (B,S,H); w*: nn.Linear layout (out,in); norm_*: (D,); cos/sin: (B,S,D);
    attention_mask: (B,S) 0/1 padding mask."""
    B, S, H = x.shape
    nh = NUM_HEADS
    D = H // nh
    BS = B * S
    scale = 1.0 / math.sqrt(D)

    x2 = x.reshape(BS, H)
    # Fused, pre-transposed QKV weight (H, 3H) so the kernel does a single x @ W.
    w_qkv = jnp.concatenate([wq.T, wk.T, wv.T], axis=1)
    wo_t = wo.T
    cos2 = cos.reshape(BS, D)
    sin2 = sin.reshape(BS, D)
    qn_w = (norm_q_w * scale).reshape(1, D).astype(jnp.float32)  # fold softmax scale
    kn_w = norm_k_w.reshape(1, D).astype(jnp.float32)

    # Additive attention bias over the flattened (B*S, B*S) key axis:
    # 0 where (same batch AND key not padded), finfo.min otherwise.
    neg = jnp.finfo(jnp.float32).min
    key_valid = attention_mask.astype(jnp.float32)                    # (B, S)
    same_batch = jnp.eye(B, dtype=jnp.float32)                        # (B, B)
    allowed = jnp.broadcast_to(
        same_batch[:, None, :, None] * key_valid[None, None, :, :], (B, S, B, S))
    bias = ((1.0 - allowed) * neg).reshape(BS, BS)
    qmask = key_valid.reshape(BS, 1)     # zero out outputs of padded query rows

    kernel = functools.partial(_attn_kernel, num_heads=nh, head_dim=D, eps=EPS)

    # No grid: the whole working set (~25 KB) is mapped into VMEM once; a batch
    # grid would only add per-step overhead on the single-TC v5e/v6e.
    out2 = pl.pallas_call(
        kernel,
        out_shape=jax.ShapeDtypeStruct((BS, H), jnp.float32),
    )(x2, w_qkv, wo_t, cos2, sin2, qn_w, kn_w, bias, qmask)
    return out2.reshape(B, S, H)


# ---------------- plain-JAX helpers & reference ----------------
def rotary_cos_sin(position_ids, head_dim, theta, dtype=jnp.float32):
    inv_freq = 1.0 / (theta ** (jnp.arange(0, head_dim, 2, dtype=jnp.float32) / head_dim))
    freqs = position_ids.astype(jnp.float32)[:, :, None] * inv_freq[None, None, :]
    emb = jnp.concatenate([freqs, freqs], axis=-1)                    # (B, S, D)
    return jnp.cos(emb).astype(dtype), jnp.sin(emb).astype(dtype)


def reference_forward(x, wq, wk, wv, wo, norm_q_w, norm_k_w, cos, sin, attention_mask):
    B, S, H = x.shape
    nh, D = NUM_HEADS, HEAD_DIM
    q = (x @ wq.T).reshape(B, S, nh, D)
    k = (x @ wk.T).reshape(B, S, nh, D)
    v = (x @ wv.T).reshape(B, S, nh, D)

    def rms(t, w):
        var = jnp.mean(jnp.square(t), axis=-1, keepdims=True)
        return t * jax.lax.rsqrt(var + EPS) * w

    def rope(t):  # cos/sin broadcast over the heads axis (intended RoPE semantics)
        half = D // 2
        rot = jnp.concatenate([-t[..., half:], t[..., :half]], axis=-1)
        return t * cos[:, :, None, :] + rot * sin[:, :, None, :]

    q = rope(rms(q, norm_q_w))
    k = rope(rms(k, norm_k_w))

    q, k, v = (t.transpose(0, 2, 1, 3) for t in (q, k, v))            # (B, nh, S, D)
    s = jnp.einsum('bhqd,bhkd->bhqk', q, k) / math.sqrt(D)
    kmask = attention_mask.astype(jnp.float32)
    s = s + (1.0 - kmask)[:, None, None, :] * jnp.finfo(jnp.float32).min
    p = jax.nn.softmax(s, axis=-1)
    o = jnp.einsum('bhqk,bhkd->bhqd', p, v)
    o = o.transpose(0, 2, 1, 3).reshape(B, S, H) @ wo.T
    return o * kmask[:, :, None]   # flash unpad: padded query rows -> 0


if __name__ == "__main__":
    key = jax.random.PRNGKey(0)
    ks = jax.random.split(key, 7)

    x = jax.random.normal(ks[0], (BATCH, SEQ, HIDDEN), jnp.float32)
    # nn.Linear weight layout: (out_features, in_features); q/k/v/o all (H, H).
    wq = jax.random.normal(ks[1], (HIDDEN, HIDDEN), jnp.float32) * 0.05
    wk = jax.random.normal(ks[2], (HIDDEN, HIDDEN), jnp.float32) * 0.05
    wv = jax.random.normal(ks[3], (HIDDEN, HIDDEN), jnp.float32) * 0.05
    wo = jax.random.normal(ks[4], (HIDDEN, HIDDEN), jnp.float32) * 0.05
    # LlamaRMSNorm weights (init = ones in the module; perturbed here to exercise the path)
    norm_q_w = 1.0 + 0.1 * jax.random.normal(ks[5], (HEAD_DIM,), jnp.float32)
    norm_k_w = 1.0 + 0.1 * jax.random.normal(ks[6], (HEAD_DIM,), jnp.float32)

    position_ids = jnp.broadcast_to(jnp.arange(SEQ)[None, :], (BATCH, SEQ))
    cos, sin = rotary_cos_sin(position_ids, HEAD_DIM, ROPE_THETA)

    # (B, S) 0/1 padding mask: last 2 tokens of batch 1 are padding.
    attention_mask = jnp.ones((BATCH, SEQ), jnp.float32).at[1, -2:].set(0.0)

    out = llama_flash_attention2_pallas(
        x, wq, wk, wv, wo, norm_q_w, norm_k_w, cos, sin, attention_mask)
    out = jax.block_until_ready(out)

    ref = reference_forward(
        x, wq, wk, wv, wo, norm_q_w, norm_k_w, cos, sin, attention_mask)

    assert out.shape == (BATCH, SEQ, HIDDEN)
    # tolerance covers the approx-reciprocal softmax normalization
    assert jnp.allclose(out, ref, atol=5e-3, rtol=5e-3), \
        "Pallas output mismatch vs JAX reference"

    print("KERNEL_OK")
</pallas_src>

<mosaic_0001>
module attributes {stable_mosaic.version = 11 : i64} {
  func.func @_attn_kernel(%arg0: memref<16x32xf32, #tpu.memory_space<vmem>>, %arg1: memref<32x96xf32, #tpu.memory_space<vmem>>, %arg2: memref<32x32xf32, #tpu.memory_space<vmem>>, %arg3: memref<16x8xf32, #tpu.memory_space<vmem>>, %arg4: memref<16x8xf32, #tpu.memory_space<vmem>>, %arg5: memref<1x8xf32, #tpu.memory_space<vmem>>, %arg6: memref<1x8xf32, #tpu.memory_space<vmem>>, %arg7: memref<16x16xf32, #tpu.memory_space<vmem>>, %arg8: memref<16x1xf32, #tpu.memory_space<vmem>>, %arg9: memref<16x32xf32, #tpu.memory_space<vmem>>) attributes {dimension_semantics = [], scalar_prefetch = 0 : i64, scratch_operands = 0 : i64, tpu.core_type = #tpu.core_type<tc>} {
    %c0 = arith.constant 0 : index
    %c0_0 = arith.constant 0 : index
    %0 = vector.load %arg0[%c0, %c0_0] : memref<16x32xf32, #tpu.memory_space<vmem>>, vector<16x32xf32>
    %c0_1 = arith.constant 0 : index
    %c0_2 = arith.constant 0 : index
    %1 = vector.load %arg1[%c0_1, %c0_2] : memref<32x96xf32, #tpu.memory_space<vmem>>, vector<32x96xf32>
    %cst = arith.constant dense<0.000000e+00> : vector<16x96xf32>
    %2 = tpu.matmul %0, %1, %cst {dimension_numbers = #tpu.dot_dimension_numbers<[1], [0], [0], [1], [0, 0, 1, 1], [], []>} : vector<16x32xf32>, vector<32x96xf32>, vector<16x96xf32> -> vector<16x96xf32>
    %3 = vector.extract_strided_slice %2 {offsets = [0, 0], sizes = [16, 32], strides = [1, 1]} : vector<16x96xf32> to vector<16x32xf32>
    %4 = vector.shape_cast %3 : vector<16x32xf32> to vector<16x4x8xf32>
    %5 = vector.extract_strided_slice %2 {offsets = [0, 32], sizes = [16, 32], strides = [1, 1]} : vector<16x96xf32> to vector<16x32xf32>
    %6 = vector.shape_cast %5 : vector<16x32xf32> to vector<16x4x8xf32>
    %7 = vector.extract_strided_slice %2 {offsets = [0, 64], sizes = [16, 32], strides = [1, 1]} : vector<16x96xf32> to vector<16x32xf32>
    %8 = vector.shape_cast %7 : vector<16x32xf32> to vector<16x4x8xf32>
    %c0_3 = arith.constant 0 : index
    %c0_4 = arith.constant 0 : index
    %9 = vector.load %arg3[%c0_3, %c0_4] : memref<16x8xf32, #tpu.memory_space<vmem>>, vector<16x8xf32>
    %10 = vector.shape_cast %9 : vector<16x8xf32> to vector<16x1x8xf32>
    %c0_5 = arith.constant 0 : index
    %c0_6 = arith.constant 0 : index
    %11 = vector.load %arg4[%c0_5, %c0_6] : memref<16x8xf32, #tpu.memory_space<vmem>>, vector<16x8xf32>
    %12 = vector.shape_cast %11 : vector<16x8xf32> to vector<16x1x8xf32>
    %13 = arith.mulf %4, %4 : vector<16x4x8xf32>
    %cst_7 = arith.constant dense<0.000000e+00> : vector<16x4xf32>
    %14 = vector.multi_reduction <add>, %13, %cst_7 [2] : vector<16x4x8xf32> to vector<16x4xf32>
    %15 = vector.shape_cast %14 : vector<16x4xf32> to vector<16x4x1xf32>
    %cst_8 = arith.constant 8.000000e+00 : f32
    %16 = vector.broadcast %cst_8 : f32 to vector<16x4x1xf32>
    %17 = arith.divf %15, %16 : vector<16x4x1xf32>
    %cst_9 = arith.constant 9.99999997E-7 : f32
    %18 = vector.broadcast %cst_9 : f32 to vector<16x4x1xf32>
    %19 = arith.addf %17, %18 : vector<16x4x1xf32>
    %20 = math.rsqrt %19 : vector<16x4x1xf32>
    %21 = vector.broadcast %20 : vector<16x4x1xf32> to vector<16x4x8xf32>
    %22 = arith.mulf %4, %21 : vector<16x4x8xf32>
    %c0_10 = arith.constant 0 : index
    %c0_11 = arith.constant 0 : index
    %23 = vector.load %arg5[%c0_10, %c0_11] : memref<1x8xf32, #tpu.memory_space<vmem>>, vector<1x8xf32>
    %24 = vector.shape_cast %23 : vector<1x8xf32> to vector<1x1x8xf32>
    %25 = vector.broadcast %24 : vector<1x1x8xf32> to vector<16x4x8xf32>
    %26 = arith.mulf %22, %25 : vector<16x4x8xf32>
    %27 = vector.extract_strided_slice %26 {offsets = [0, 0, 4], sizes = [16, 4, 4], strides = [1, 1, 1]} : vector<16x4x8xf32> to vector<16x4x4xf32>
    %cst_12 = arith.constant 0.000000e+00 : f32
    %28 = vector.broadcast %cst_12 : f32 to vector<16x4x4xf32>
    %29 = arith.subf %28, %27 : vector<16x4x4xf32>
    %30 = vector.extract_strided_slice %26 {offsets = [0, 0, 0], sizes = [16, 4, 4], strides = [1, 1, 1]} : vector<16x4x8xf32> to vector<16x4x4xf32>
    %31 = tpu.concatenate %29, %30 in 2 : vector<16x4x4xf32>, vector<16x4x4xf32> -> vector<16x4x8xf32>
    %32 = vector.broadcast %10 : vector<16x1x8xf32> to vector<16x4x8xf32>
    %33 = arith.mulf %26, %32 : vector<16x4x8xf32>
    %34 = vector.broadcast %12 : vector<16x1x8xf32> to vector<16x4x8xf32>
    %35 = arith.mulf %31, %34 : vector<16x4x8xf32>
    %36 = arith.addf %33, %35 : vector<16x4x8xf32>
    %37 = arith.mulf %6, %6 : vector<16x4x8xf32>
    %cst_13 = arith.constant dense<0.000000e+00> : vector<16x4xf32>
    %38 = vector.multi_reduction <add>, %37, %cst_13 [2] : vector<16x4x8xf32> to vector<16x4xf32>
    %39 = vector.shape_cast %38 : vector<16x4xf32> to vector<16x4x1xf32>
    %cst_14 = arith.constant 8.000000e+00 : f32
    %40 = vector.broadcast %cst_14 : f32 to vector<16x4x1xf32>
    %41 = arith.divf %39, %40 : vector<16x4x1xf32>
    %cst_15 = arith.constant 9.99999997E-7 : f32
    %42 = vector.broadcast %cst_15 : f32 to vector<16x4x1xf32>
    %43 = arith.addf %41, %42 : vector<16x4x1xf32>
    %44 = math.rsqrt %43 : vector<16x4x1xf32>
    %45 = vector.broadcast %44 : vector<16x4x1xf32> to vector<16x4x8xf32>
    %46 = arith.mulf %6, %45 : vector<16x4x8xf32>
    %c0_16 = arith.constant 0 : index
    %c0_17 = arith.constant 0 : index
    %47 = vector.load %arg6[%c0_16, %c0_17] : memref<1x8xf32, #tpu.memory_space<vmem>>, vector<1x8xf32>
    %48 = vector.shape_cast %47 : vector<1x8xf32> to vector<1x1x8xf32>
    %49 = vector.broadcast %48 : vector<1x1x8xf32> to vector<16x4x8xf32>
    %50 = arith.mulf %46, %49 : vector<16x4x8xf32>
    %51 = vector.extract_strided_slice %50 {offsets = [0, 0, 4], sizes = [16, 4, 4], strides = [1, 1, 1]} : vector<16x4x8xf32> to vector<16x4x4xf32>
    %cst_18 = arith.constant 0.000000e+00 : f32
    %52 = vector.broadcast %cst_18 : f32 to vector<16x4x4xf32>
    %53 = arith.subf %52, %51 : vector<16x4x4xf32>
    %54 = vector.extract_strided_slice %50 {offsets = [0, 0, 0], sizes = [16, 4, 4], strides = [1, 1, 1]} : vector<16x4x8xf32> to vector<16x4x4xf32>
    %55 = tpu.concatenate %53, %54 in 2 : vector<16x4x4xf32>, vector<16x4x4xf32> -> vector<16x4x8xf32>
    %56 = vector.broadcast %10 : vector<16x1x8xf32> to vector<16x4x8xf32>
    %57 = arith.mulf %50, %56 : vector<16x4x8xf32>
    %58 = vector.broadcast %12 : vector<16x1x8xf32> to vector<16x4x8xf32>
    %59 = arith.mulf %55, %58 : vector<16x4x8xf32>
    %60 = arith.addf %57, %59 : vector<16x4x8xf32>
    %61 = tpu.transpose %36, [1, 0, 2] : vector<16x4x8xf32> -> vector<4x16x8xf32>
    %62 = tpu.transpose %60, [1, 0, 2] : vector<16x4x8xf32> -> vector<4x16x8xf32>
    %63 = tpu.transpose %8, [1, 0, 2] : vector<16x4x8xf32> -> vector<4x16x8xf32>
    "tpu.trace_start"() <{level = 10 : i32, message = "hqd,hkd->hqk"}> : () -> ()
    %cst_19 = arith.constant dense<0.000000e+00> : vector<4x16x16xf32>
    %64 = tpu.matmul %61, %62, %cst_19 {dimension_numbers = #tpu.dot_dimension_numbers<[2], [2], [1], [1], [0, 0, 0, 1, 1, 1], [0], [0]>} : vector<4x16x8xf32>, vector<4x16x8xf32>, vector<4x16x16xf32> -> vector<4x16x16xf32>
    "tpu.trace_stop"() : () -> ()
    %c0_20 = arith.constant 0 : index
    %c0_21 = arith.constant 0 : index
    %65 = vector.load %arg7[%c0_20, %c0_21] : memref<16x16xf32, #tpu.memory_space<vmem>>, vector<16x16xf32>
    %66 = vector.shape_cast %65 : vector<16x16xf32> to vector<1x16x16xf32>
    %67 = vector.broadcast %66 : vector<1x16x16xf32> to vector<4x16x16xf32>
    %68 = arith.addf %64, %67 : vector<4x16x16xf32>
    %cst_22 = arith.constant dense<0xFF800000> : vector<4x16xf32>
    %69 = vector.multi_reduction <maximumf>, %68, %cst_22 [2] : vector<4x16x16xf32> to vector<4x16xf32>
    %70 = vector.shape_cast %69 : vector<4x16xf32> to vector<4x16x1xf32>
    %71 = vector.broadcast %70 : vector<4x16x1xf32> to vector<4x16x16xf32>
    %72 = arith.subf %68, %71 : vector<4x16x16xf32>
    %73 = math.exp %72 : vector<4x16x16xf32>
    %cst_23 = arith.constant dense<0.000000e+00> : vector<4x16xf32>
    %74 = vector.multi_reduction <add>, %73, %cst_23 [2] : vector<4x16x16xf32> to vector<4x16xf32>
    %75 = vector.shape_cast %74 : vector<4x16xf32> to vector<4x16x1xf32>
    %76 = tpu.reciprocal %75 {approx = true} : vector<4x16x1xf32> -> vector<4x16x1xf32>
    %77 = vector.broadcast %76 : vector<4x16x1xf32> to vector<4x16x16xf32>
    %78 = arith.mulf %73, %77 : vector<4x16x16xf32>
    "tpu.trace_start"() <{level = 10 : i32, message = "hqk,hkd->hqd"}> : () -> ()
    %cst_24 = arith.constant dense<0.000000e+00> : vector<4x16x8xf32>
    %79 = tpu.matmul %78, %63, %cst_24 {dimension_numbers = #tpu.dot_dimension_numbers<[2], [1], [1], [2], [0, 0, 0, 1, 1, 2], [0], [0]>} : vector<4x16x16xf32>, vector<4x16x8xf32>, vector<4x16x8xf32> -> vector<4x16x8xf32>
    "tpu.trace_stop"() : () -> ()
    %80 = tpu.transpose %79, [1, 0, 2] : vector<4x16x8xf32> -> vector<16x4x8xf32>
    %81 = vector.shape_cast %80 : vector<16x4x8xf32> to vector<16x32xf32>
    %c0_25 = arith.constant 0 : index
    %c0_26 = arith.constant 0 : index
    %82 = vector.load %arg2[%c0_25, %c0_26] : memref<32x32xf32, #tpu.memory_space<vmem>>, vector<32x32xf32>
    %cst_27 = arith.constant dense<0.000000e+00> : vector<16x32xf32>
    %83 = tpu.matmul %81, %82, %cst_27 {dimension_numbers = #tpu.dot_dimension_numbers<[1], [0], [0], [1], [0, 0, 1, 1], [], []>} : vector<16x32xf32>, vector<32x32xf32>, vector<16x32xf32> -> vector<16x32xf32>
    %c0_28 = arith.constant 0 : index
    %c0_29 = arith.constant 0 : index
    %84 = vector.load %arg8[%c0_28, %c0_29] : memref<16x1xf32, #tpu.memory_space<vmem>>, vector<16x1xf32>
    %85 = vector.broadcast %84 : vector<16x1xf32> to vector<16x32xf32>
    %86 = arith.mulf %83, %85 : vector<16x32xf32>
    %c0_30 = arith.constant 0 : index
    %c0_31 = arith.constant 0 : index
    %87 = vector.load %arg9[%c0_30, %c0_31] : memref<16x32xf32, #tpu.memory_space<vmem>>, vector<16x32xf32>
    tpu.vector_store %arg9[%c0_30, %c0_31], %86 {strides = array<i32>} : memref<16x32xf32, #tpu.memory_space<vmem>>, vector<16x32xf32>,
    return
  }
}

</mosaic_0001>

<llo_original>
// kernel: tpu_custom_call.1
$region0: #{tpu_custom_call.1}
  #allocation0 [shape = 'u32[]', space=smem, size = 0x4, offset = 0x4, fixed_abs, tag = 'smem constant byte address 0x4 - core index']
  #allocation1 [shape = 'u32[144,128]{1,0:T(1,128)}', space=vmem, size = 0x12000, scoped, tag = 'internal scratch']
  %s0 = inlined_call_operand.hbm [shape: f32[16,32], index: 0, kind: input, shape index: {}]
  %s1 = inlined_call_operand.vmem [shape: f32[32,96], index: 1, kind: input, shape index: {}]
  %s2 = inlined_call_operand.vmem [shape: f32[32,32], index: 2, kind: input, shape index: {}]
  %s3 = inlined_call_operand.vmem [shape: f32[16,8], index: 3, kind: input, shape index: {}]
  %s4 = inlined_call_operand.vmem [shape: f32[16,8], index: 4, kind: input, shape index: {}]
  %s5 = inlined_call_operand.vmem [shape: f32[1,8], index: 5, kind: input, shape index: {}]
  %s6 = inlined_call_operand.vmem [shape: f32[1,8], index: 6, kind: input, shape index: {}]
  %s7 = inlined_call_operand.hbm [shape: f32[16,16], index: 7, kind: input, shape index: {}]
  %s8 = inlined_call_operand.vmem [shape: f32[16,1], index: 8, kind: input, shape index: {}]
  %s9 = inlined_call_operand.hbm [shape: f32[16,32], index: 9, kind: output, shape index: {}]
  %s10 = sld [smem:[#allocation0]]
  $region54: #{tpu_custom_call.1} parent=0
    _
  %s12 = ssub.s32 1, %s10
  %s13 = scalar_select 0, %s12, %s10
  $region1: #{tpu_custom_call.1} parent=0
    #allocation2 [shape = 'u8[8192]{0}', space=vmem, size = 0x2000, scoped, tag = 'input window, operand 0, single buffered']
    #allocation3 [shape = 's32[1]{0}', space=sflag, size = 0x4, scoped, tag = 'scoped memory for tpu_custom_call.1']
    #allocation4 [shape = 's32[1]{0}', space=sflag, size = 0x4, scoped, tag = 'scoped memory for tpu_custom_call.1']
    #allocation5 [shape = 'u8[8192]{0}', space=vmem, size = 0x2000, scoped, tag = 'input window, operand 7, single buffered']
    #allocation6 [shape = 's32[1]{0}', space=sflag, size = 0x4, scoped, tag = 'scoped memory for tpu_custom_call.1']
    #allocation7 [shape = 'u8[8192]{0}', space=vmem, size = 0x2000, scoped, tag = 'output window, operand 0, single buffered']
    %14 = vsyncpa [#allocation3], 0
    %15 = vsyncpa [#allocation6], 0
    %16 = vsyncpa [#allocation4], 0
    // Predicated region
    $region2: #{tpu_custom_call.1} parent=1 // pred_check
      _
    $region3: #{tpu_custom_call.1} parent=1 // pred_check_branch
      %18 = sbr.rel (0) target = $region5
    $region4: #{tpu_custom_call.1} parent=1 // pred_region
      %s20 = ssub.s32 256, 256
      %21 = vsyncadd [#allocation3], %s20
      %s22 = sshll.u32 [#allocation2], 4
      %s23 = int_to_ptr.vmem [resolvable:$true] %s22
      %28 = dma.hbm_to_vmem [thread:$0]  %s0, 256, %s23, [#allocation3], 128, 128, 8
    $region5: #{tpu_custom_call.1} parent=1 // pred_fallthru
      _
    // Predicated region
    $region6: #{tpu_custom_call.1} parent=1 // pred_check
      _
    $region7: #{tpu_custom_call.1} parent=1 // pred_check_branch
      %30 = sbr.rel (0) target = $region9
    $region8: #{tpu_custom_call.1} parent=1 // pred_region
      _
    $region9: #{tpu_custom_call.1} parent=1 // pred_fallthru
      _
    // Predicated region
    $region10: #{tpu_custom_call.1} parent=1 // pred_check
      _
    $region11: #{tpu_custom_call.1} parent=1 // pred_check_branch
      %32 = sbr.rel (0) target = $region13
    $region12: #{tpu_custom_call.1} parent=1 // pred_region
      _
    $region13: #{tpu_custom_call.1} parent=1 // pred_fallthru
      _
    // Predicated region
    $region14: #{tpu_custom_call.1} parent=1 // pred_check
      _
    $region15: #{tpu_custom_call.1} parent=1 // pred_check_branch
      %34 = sbr.rel (0) target = $region17
    $region16: #{tpu_custom_call.1} parent=1 // pred_region
      _
    $region17: #{tpu_custom_call.1} parent=1 // pred_fallthru
      _
    // Predicated region
    $region18: #{tpu_custom_call.1} parent=1 // pred_check
      _
    $region19: #{tpu_custom_call.1} parent=1 // pred_check_branch
      %36 = sbr.rel (0) target = $region21
    $region20: #{tpu_custom_call.1} parent=1 // pred_region
      _
    $region21: #{tpu_custom_call.1} parent=1 // pred_fallthru
      _
    // Predicated region
    $region22: #{tpu_custom_call.1} parent=1 // pred_check
      _
    $region23: #{tpu_custom_call.1} parent=1 // pred_check_branch
      %38 = sbr.rel (0) target = $region25
    $region24: #{tpu_custom_call.1} parent=1 // pred_region
      _
    $region25: #{tpu_custom_call.1} parent=1 // pred_fallthru
      _
    // Predicated region
    $region26: #{tpu_custom_call.1} parent=1 // pred_check
      _
    $region27: #{tpu_custom_call.1} parent=1 // pred_check_branch
      %40 = sbr.rel (0) target = $region29
    $region28: #{tpu_custom_call.1} parent=1 // pred_region
      _
    $region29: #{tpu_custom_call.1} parent=1 // pred_fallthru
      _
    // Predicated region
    $region30: #{tpu_custom_call.1} parent=1 // pred_check
      _
    $region31: #{tpu_custom_call.1} parent=1 // pred_check_branch
      %42 = sbr.rel (0) target = $region33
    $region32: #{tpu_custom_call.1} parent=1 // pred_region
      %s44 = ssub.s32 256, 256
      %45 = vsyncadd [#allocation6], %s44
      %s46 = sshll.u32 [#allocation5], 4
      %s47 = int_to_ptr.vmem [resolvable:$true] %s46
      %52 = dma.hbm_to_vmem [thread:$0]  %s7, 256, %s47, [#allocation6], 128, 128, 8
    $region33: #{tpu_custom_call.1} parent=1 // pred_fallthru
      _
    // Predicated region
    $region34: #{tpu_custom_call.1} parent=1 // pred_check
      _
    $region35: #{tpu_custom_call.1} parent=1 // pred_check_branch
      %54 = sbr.rel (0) target = $region37
    $region36: #{tpu_custom_call.1} parent=1 // pred_region
      _
    $region37: #{tpu_custom_call.1} parent=1 // pred_fallthru
      _
    // Predicated region
    $region38: #{tpu_custom_call.1} parent=1 // pred_check
      _
    $region39: #{tpu_custom_call.1} parent=1 // pred_check_branch
      %56 = sbr.rel (0) target = $region41
    $region40: #{tpu_custom_call.1} parent=1 // pred_region
      %57 = dma.done [#allocation3], 256
    $region41: #{tpu_custom_call.1} parent=1 // pred_fallthru
      _
    // Predicated region
    $region42: #{tpu_custom_call.1} parent=1 // pred_check
      _
    $region43: #{tpu_custom_call.1} parent=1 // pred_check_branch
      %59 = sbr.rel (0) target = $region45
    $region44: #{tpu_custom_call.1} parent=1 // pred_region
      %60 = dma.done [#allocation6], 256
    $region45: #{tpu_custom_call.1} parent=1 // pred_fallthru
      _
    %v61 = vld [vmem:[#allocation2] sm:$0xff]
    %v62 = vld [vmem:[#allocation2 + $0x8] sm:$0xff]
    %v63 = vld [vmem:[%s1] sm:$0xff]
    %v64 = vld [vmem:[%s1 + $0x8] sm:$0xff]
    %v65 = vld [vmem:[%s1 + $0x10] sm:$0xff]
    %v66 = vld [vmem:[%s1 + $0x18] sm:$0xff]
    %vm67 = vcmask 261120
    %v69 = vsel %vm67, %v61, 0
    %v72 = vsel %vm67, %v62, 0
    %74 = vmatprep.subr.mxu0 0.0
    %75 = vmatpush1.msra.mxu0 0.0
    %76 = vmatprep.subr.mxu0 0.0
    %77 = vmatpush1.msra.mxu0 0.0
    %78 = vmatprep.subr.mxu0 0.0
    %79 = vmatpush1.msra.mxu0 0.0
    %80 = vmatprep.subr.mxu0 0.0
    %81 = vmatpush1.msra.mxu0 0.0
    %82 = vmatprep.subr.mxu0 0.0
    %83 = vmatpush1.msra.mxu0 0.0
    %84 = vmatprep.subr.mxu0 0.0
    %85 = vmatpush1.msra.mxu0 0.0
    %86 = vmatprep.subr.mxu0 0.0
    %87 = vmatpush1.msra.mxu0 0.0
    %88 = vmatprep.subr.mxu0 0.0
    %89 = vmatpush1.msra.mxu0 0.0
    %90 = vmatprep.subr.mxu0 0.0
    %91 = vmatpush1.msra.mxu0 0.0
    %92 = vmatprep.subr.mxu0 0.0
    %93 = vmatpush1.msra.mxu0 0.0
    %94 = vmatprep.subr.mxu0 0.0
    %95 = vmatpush1.msra.mxu0 0.0
    %96 = vmatprep.subr.mxu0 0.0
    %97 = vmatpush1.msra.mxu0 0.0
    %98 = vmatprep.subr.mxu0 0.0
    %99 = vmatpush1.msra.mxu0 %v66
    %100 = vmatprep.subr.mxu0 0.0
    %101 = vmatpush1.msra.mxu0 %v65
    %102 = vmatprep.subr.mxu0 0.0
    %103 = vmatpush1.msra.mxu0 %v64
    %104 = vmatprep.subr.mxu0 0.0
    %105 = vmatpush1.msra.mxu0 %v63
    %106 = vmatprep.subr.mxu0 0.0
    %107 = vmatpush2.msra.mxu0 0.0
    %108 = vmatprep.subr.mxu0 0.0
    %109 = vmatpush2.msra.mxu0 0.0
    %110 = vmatprep.subr.mxu0 0.0
    %111 = vmatpush2.msra.mxu0 0.0
    %112 = vmatprep.subr.mxu0 0.0
    %113 = vmatpush2.msra.mxu0 0.0
    %114 = vmatprep.subr.mxu0 0.0
    %115 = vmatpush2.msra.mxu0 0.0
    %116 = vmatprep.subr.mxu0 0.0
    %117 = vmatpush2.msra.mxu0 0.0
    %118 = vmatprep.subr.mxu0 0.0
    %119 = vmatpush2.msra.mxu0 0.0
    %120 = vmatprep.subr.mxu0 0.0
    %121 = vmatpush2.msra.mxu0 0.0
    %122 = vmatprep.subr.mxu0 0.0
    %123 = vmatpush2.msra.mxu0 0.0
    %124 = vmatprep.subr.mxu0 0.0
    %125 = vmatpush2.msra.mxu0 0.0
    %126 = vmatprep.subr.mxu0 0.0
    %127 = vmatpush2.msra.mxu0 0.0
    %128 = vmatprep.subr.mxu0 0.0
    %129 = vmatpush2.msra.mxu0 0.0
    %130 = vmatprep.subr.mxu0 0.0
    %131 = vmatpush2.msra.mxu0 0.0
    %132 = vmatprep.subr.mxu0 0.0
    %133 = vmatpush2.msra.mxu0 0.0
    %134 = vmatprep.subr.mxu0 0.0
    %135 = vmatpush2.msra.mxu0 0.0
    %136 = vmatprep.subr.mxu0 0.0
    %137 = vmatpush2.msra.mxu0 0.0
    %138 = vmatprep.mubr.f32.mxu0 0.0
    %139 = vmatmul.mubr.f32.gmra.mxu0 %v69
    %v140 = vpop.f32.mrf.mxu0
    %v141 = vadd.f32 0.0, %v140
    %v142 = vpop.f32.mrf.mxu0
    %143 = vmatprep.mubr.f32.mxu0 0.0
    %144 = vmatmul.mubr.f32.gmra.mxu0 %v72
    %v145 = vpop.f32.mrf.mxu0
    %v146 = vadd.f32 0.0, %v145
    %v147 = vpop.f32.mrf.mxu0
    %148 = vdwg.mxu0
    %151 = vrot.lane.b32.xlu0 %v141, 120
    %v152 = vpop.permute.xlu0 %151
    %153 = vrot.lane.b32.xlu0 %v146, 120
    %v154 = vpop.permute.xlu0 %153
    %157 = vrot.lane.b32.xlu0 %v141, 112
    %v158 = vpop.permute.xlu0 %157
    %159 = vrot.lane.b32.xlu0 %v146, 112
    %v160 = vpop.permute.xlu0 %159
    %163 = vrot.lane.b32.xlu0 %v141, 104
    %v164 = vpop.permute.xlu0 %163
    %165 = vrot.lane.b32.xlu0 %v146, 104
    %v166 = vpop.permute.xlu0 %165
    %v169 = vcombine.low %v141, %v158
    %v170 = vcombine.high %v141, %v158
    %v172 = vunpack.c.l.s4 1983009808
    %v173 = vunpack.c.0.s8 %v172
    %v174 = vlaneseq
    %v175 = vshrl.u32 %v174, 7
    %v176 = vsub.s32 %v173, %v175
    %v177 = vrot.slane %v169, %v176
    %v179 = vunpack.c.l.s4 1983009808
    %v180 = vunpack.c.0.s8 %v179
    %v181 = vlaneseq
    %v182 = vshrl.u32 %v181, 7
    %v183 = vsub.s32 %v180, %v182
    %v184 = vrot.slane %v170, %v183
    %v185 = vcombine.low %v152, %v164
    %v186 = vcombine.high %v152, %v164
    %v188 = vunpack.c.l.s4 1983009808
    %v189 = vunpack.c.0.s8 %v188
    %v190 = vlaneseq
    %v191 = vshrl.u32 %v190, 7
    %v192 = vsub.s32 %v189, %v191
    %v193 = vrot.slane %v185, %v192
    %v195 = vunpack.c.l.s4 1983009808
    %v196 = vunpack.c.0.s8 %v195
    %v197 = vlaneseq
    %v198 = vshrl.u32 %v197, 7
    %v199 = vsub.s32 %v196, %v198
    %v200 = vrot.slane %v186, %v199
    %v201 = vcombine.low %v177, %v193
    %v202 = vcombine.high %v177, %v193
    %v204 = vunpack.c.l.s4 1934713408
    %v205 = vunpack.c.0.s8 %v204
    %v206 = vlaneseq
    %v207 = vshrl.u32 %v206, 7
    %v208 = vsub.s32 %v205, %v207
    %v209 = vrot.slane %v201, %v208
    %v211 = vunpack.c.l.s4 1934713408
    %v212 = vunpack.c.0.s8 %v211
    %v213 = vlaneseq
    %v214 = vshrl.u32 %v213, 7
    %v215 = vsub.s32 %v212, %v214
    %v216 = vrot.slane %v202, %v215
    %v217 = vcombine.low %v184, %v200
    %v218 = vcombine.high %v184, %v200
    %v220 = vunpack.c.l.s4 1934713408
    %v221 = vunpack.c.0.s8 %v220
    %v222 = vlaneseq
    %v223 = vshrl.u32 %v222, 7
    %v224 = vsub.s32 %v221, %v223
    %v225 = vrot.slane %v217, %v224
    %v227 = vunpack.c.l.s4 1934713408
    %v228 = vunpack.c.0.s8 %v227
    %v229 = vlaneseq
    %v230 = vshrl.u32 %v229, 7
    %v231 = vsub.s32 %v228, %v230
    %v232 = vrot.slane %v218, %v231
    %v233 = vcombine.high %v209, 0.0
    %v234 = vcombine.high %v216, 0.0
    %v235 = vcombine.high %v225, 0.0
    %v236 = vcombine.high %v232, 0.0
    %v237 = vcombine.low %v146, %v160
    %v238 = vcombine.high %v146, %v160
    %v240 = vunpack.c.l.s4 1983009808
    %v241 = vunpack.c.0.s8 %v240
    %v242 = vlaneseq
    %v243 = vshrl.u32 %v242, 7
    %v244 = vsub.s32 %v241, %v243
    %v245 = vrot.slane %v237, %v244
    %v247 = vunpack.c.l.s4 1983009808
    %v248 = vunpack.c.0.s8 %v247
    %v249 = vlaneseq
    %v250 = vshrl.u32 %v249, 7
    %v251 = vsub.s32 %v248, %v250
    %v252 = vrot.slane %v238, %v251
    %v253 = vcombine.low %v154, %v166
    %v254 = vcombine.high %v154, %v166
    %v256 = vunpack.c.l.s4 1983009808
    %v257 = vunpack.c.0.s8 %v256
    %v258 = vlaneseq
    %v259 = vshrl.u32 %v258, 7
    %v260 = vsub.s32 %v257, %v259
    %v261 = vrot.slane %v253, %v260
    %v263 = vunpack.c.l.s4 1983009808
    %v264 = vunpack.c.0.s8 %v263
    %v265 = vlaneseq
    %v266 = vshrl.u32 %v265, 7
    %v267 = vsub.s32 %v264, %v266
    %v268 = vrot.slane %v254, %v267
    %v269 = vcombine.low %v245, %v261
    %v270 = vcombine.high %v245, %v261
    %v272 = vunpack.c.l.s4 1934713408
    %v273 = vunpack.c.0.s8 %v272
    %v274 = vlaneseq
    %v275 = vshrl.u32 %v274, 7
    %v276 = vsub.s32 %v273, %v275
    %v277 = vrot.slane %v269, %v276
    %v279 = vunpack.c.l.s4 1934713408
    %v280 = vunpack.c.0.s8 %v279
    %v281 = vlaneseq
    %v282 = vshrl.u32 %v281, 7
    %v283 = vsub.s32 %v280, %v282
    %v284 = vrot.slane %v270, %v283
    %v285 = vcombine.low %v252, %v268
    %v286 = vcombine.high %v252, %v268
    %v288 = vunpack.c.l.s4 1934713408
    %v289 = vunpack.c.0.s8 %v288
    %v290 = vlaneseq
    %v291 = vshrl.u32 %v290, 7
    %v292 = vsub.s32 %v289, %v291
    %v293 = vrot.slane %v285, %v292
    %v295 = vunpack.c.l.s4 1934713408
    %v296 = vunpack.c.0.s8 %v295
    %v297 = vlaneseq
    %v298 = vshrl.u32 %v297, 7
    %v299 = vsub.s32 %v296, %v298
    %v300 = vrot.slane %v286, %v299
    %v301 = vcombine.high %v277, 0.0
    %v302 = vcombine.high %v284, 0.0
    %v303 = vcombine.high %v293, 0.0
    %v304 = vcombine.high %v300, 0.0
    %305 = vrot.lane.b32.xlu0 %v141, 96
    %v306 = vpop.permute.xlu0 %305
    %307 = vrot.lane.b32.xlu0 %v146, 96
    %v308 = vpop.permute.xlu0 %307
    %309 = vrot.lane.b32.xlu0 %v152, 96
    %v310 = vpop.permute.xlu0 %309
    %311 = vrot.lane.b32.xlu0 %v154, 96
    %v312 = vpop.permute.xlu0 %311
    %313 = vrot.lane.b32.xlu0 %v158, 96
    %v314 = vpop.permute.xlu0 %313
    %315 = vrot.lane.b32.xlu0 %v160, 96
    %v316 = vpop.permute.xlu0 %315
    %317 = vrot.lane.b32.xlu0 %v164, 96
    %v318 = vpop.permute.xlu0 %317
    %319 = vrot.lane.b32.xlu0 %v166, 96
    %v320 = vpop.permute.xlu0 %319
    %v329 = vcombine.low %v306, %v314
    %v330 = vcombine.high %v306, %v314
    %v332 = vunpack.c.l.s4 1983009808
    %v333 = vunpack.c.0.s8 %v332
    %v334 = vlaneseq
    %v335 = vshrl.u32 %v334, 7
    %v336 = vsub.s32 %v333, %v335
    %v337 = vrot.slane %v329, %v336
    %v339 = vunpack.c.l.s4 1983009808
    %v340 = vunpack.c.0.s8 %v339
    %v341 = vlaneseq
    %v342 = vshrl.u32 %v341, 7
    %v343 = vsub.s32 %v340, %v342
    %v344 = vrot.slane %v330, %v343
    %v345 = vcombine.low %v310, %v318
    %v346 = vcombine.high %v310, %v318
    %v348 = vunpack.c.l.s4 1983009808
    %v349 = vunpack.c.0.s8 %v348
    %v350 = vlaneseq
    %v351 = vshrl.u32 %v350, 7
    %v352 = vsub.s32 %v349, %v351
    %v353 = vrot.slane %v345, %v352
    %v355 = vunpack.c.l.s4 1983009808
    %v356 = vunpack.c.0.s8 %v355
    %v357 = vlaneseq
    %v358 = vshrl.u32 %v357, 7
    %v359 = vsub.s32 %v356, %v358
    %v360 = vrot.slane %v346, %v359
    %v361 = vcombine.low %v337, %v353
    %v362 = vcombine.high %v337, %v353
    %v364 = vunpack.c.l.s4 1934713408
    %v365 = vunpack.c.0.s8 %v364
    %v366 = vlaneseq
    %v367 = vshrl.u32 %v366, 7
    %v368 = vsub.s32 %v365, %v367
    %v369 = vrot.slane %v361, %v368
    %v371 = vunpack.c.l.s4 1934713408
    %v372 = vunpack.c.0.s8 %v371
    %v373 = vlaneseq
    %v374 = vshrl.u32 %v373, 7
    %v375 = vsub.s32 %v372, %v374
    %v376 = vrot.slane %v362, %v375
    %v377 = vcombine.low %v344, %v360
    %v378 = vcombine.high %v344, %v360
    %v380 = vunpack.c.l.s4 1934713408
    %v381 = vunpack.c.0.s8 %v380
    %v382 = vlaneseq
    %v383 = vshrl.u32 %v382, 7
    %v384 = vsub.s32 %v381, %v383
    %v385 = vrot.slane %v377, %v384
    %v387 = vunpack.c.l.s4 1934713408
    %v388 = vunpack.c.0.s8 %v387
    %v389 = vlaneseq
    %v390 = vshrl.u32 %v389, 7
    %v391 = vsub.s32 %v388, %v390
    %v392 = vrot.slane %v378, %v391
    %v393 = vcombine.high %v369, 0.0
    %v394 = vcombine.high %v376, 0.0
    %v395 = vcombine.high %v385, 0.0
    %v396 = vcombine.high %v392, 0.0
    %v397 = vcombine.low %v308, %v316
    %v398 = vcombine.high %v308, %v316
    %v400 = vunpack.c.l.s4 1983009808
    %v401 = vunpack.c.0.s8 %v400
    %v402 = vlaneseq
    %v403 = vshrl.u32 %v402, 7
    %v404 = vsub.s32 %v401, %v403
    %v405 = vrot.slane %v397, %v404
    %v407 = vunpack.c.l.s4 1983009808
    %v408 = vunpack.c.0.s8 %v407
    %v409 = vlaneseq
    %v410 = vshrl.u32 %v409, 7
    %v411 = vsub.s32 %v408, %v410
    %v412 = vrot.slane %v398, %v411
    %v413 = vcombine.low %v312, %v320
    %v414 = vcombine.high %v312, %v320
    %v416 = vunpack.c.l.s4 1983009808
    %v417 = vunpack.c.0.s8 %v416
    %v418 = vlaneseq
    %v419 = vshrl.u32 %v418, 7
    %v420 = vsub.s32 %v417, %v419
    %v421 = vrot.slane %v413, %v420
    %v423 = vunpack.c.l.s4 1983009808
    %v424 = vunpack.c.0.s8 %v423
    %v425 = vlaneseq
    %v426 = vshrl.u32 %v425, 7
    %v427 = vsub.s32 %v424, %v426
    %v428 = vrot.slane %v414, %v427
    %v429 = vcombine.low %v405, %v421
    %v430 = vcombine.high %v405, %v421
    %v432 = vunpack.c.l.s4 1934713408
    %v433 = vunpack.c.0.s8 %v432
    %v434 = vlaneseq
    %v435 = vshrl.u32 %v434, 7
    %v436 = vsub.s32 %v433, %v435
    %v437 = vrot.slane %v429, %v436
    %v439 = vunpack.c.l.s4 1934713408
    %v440 = vunpack.c.0.s8 %v439
    %v441 = vlaneseq
    %v442 = vshrl.u32 %v441, 7
    %v443 = vsub.s32 %v440, %v442
    %v444 = vrot.slane %v430, %v443
    %v445 = vcombine.low %v412, %v428
    %v446 = vcombine.high %v412, %v428
    %v448 = vunpack.c.l.s4 1934713408
    %v449 = vunpack.c.0.s8 %v448
    %v450 = vlaneseq
    %v451 = vshrl.u32 %v450, 7
    %v452 = vsub.s32 %v449, %v451
    %v453 = vrot.slane %v445, %v452
    %v455 = vunpack.c.l.s4 1934713408
    %v456 = vunpack.c.0.s8 %v455
    %v457 = vlaneseq
    %v458 = vshrl.u32 %v457, 7
    %v459 = vsub.s32 %v456, %v458
    %v460 = vrot.slane %v446, %v459
    %v461 = vcombine.high %v437, 0.0
    %v462 = vcombine.high %v444, 0.0
    %v463 = vcombine.high %v453, 0.0
    %v464 = vcombine.high %v460, 0.0
    %465 = vrot.lane.b32.xlu0 %v141, 64
    %v466 = vpop.permute.xlu0 %465
    %467 = vrot.lane.b32.xlu0 %v146, 64
    %v468 = vpop.permute.xlu0 %467
    %469 = vrot.lane.b32.xlu0 %v152, 64
    %v470 = vpop.permute.xlu0 %469
    %471 = vrot.lane.b32.xlu0 %v154, 64
    %v472 = vpop.permute.xlu0 %471
    %473 = vrot.lane.b32.xlu0 %v158, 64
    %v474 = vpop.permute.xlu0 %473
    %475 = vrot.lane.b32.xlu0 %v160, 64
    %v476 = vpop.permute.xlu0 %475
    %477 = vrot.lane.b32.xlu0 %v164, 64
    %v478 = vpop.permute.xlu0 %477
    %479 = vrot.lane.b32.xlu0 %v166, 64
    %v480 = vpop.permute.xlu0 %479
    %v489 = vcombine.low %v466, %v474
    %v490 = vcombine.high %v466, %v474
    %v492 = vunpack.c.l.s4 1983009808
    %v493 = vunpack.c.0.s8 %v492
    %v494 = vlaneseq
    %v495 = vshrl.u32 %v494, 7
    %v496 = vsub.s32 %v493, %v495
    %v497 = vrot.slane %v489, %v496
    %v499 = vunpack.c.l.s4 1983009808
    %v500 = vunpack.c.0.s8 %v499
    %v501 = vlaneseq
    %v502 = vshrl.u32 %v501, 7
    %v503 = vsub.s32 %v500, %v502
    %v504 = vrot.slane %v490, %v503
    %v505 = vcombine.low %v470, %v478
    %v506 = vcombine.high %v470, %v478
    %v508 = vunpack.c.l.s4 1983009808
    %v509 = vunpack.c.0.s8 %v508
    %v510 = vlaneseq
    %v511 = vshrl.u32 %v510, 7
    %v512 = vsub.s32 %v509, %v511
    %v513 = vrot.slane %v505, %v512
    %v515 = vunpack.c.l.s4 1983009808
    %v516 = vunpack.c.0.s8 %v515
    %v517 = vlaneseq
    %v518 = vshrl.u32 %v517, 7
    %v519 = vsub.s32 %v516, %v518
    %v520 = vrot.slane %v506, %v519
    %v521 = vcombine.low %v497, %v513
    %v522 = vcombine.high %v497, %v513
    %v524 = vunpack.c.l.s4 1934713408
    %v525 = vunpack.c.0.s8 %v524
    %v526 = vlaneseq
    %v527 = vshrl.u32 %v526, 7
    %v528 = vsub.s32 %v525, %v527
    %v529 = vrot.slane %v521, %v528
    %v531 = vunpack.c.l.s4 1934713408
    %v532 = vunpack.c.0.s8 %v531
    %v533 = vlaneseq
    %v534 = vshrl.u32 %v533, 7
    %v535 = vsub.s32 %v532, %v534
    %v536 = vrot.slane %v522, %v535
    %v537 = vcombine.low %v504, %v520
    %v538 = vcombine.high %v504, %v520
    %v540 = vunpack.c.l.s4 1934713408
    %v541 = vunpack.c.0.s8 %v540
    %v542 = vlaneseq
    %v543 = vshrl.u32 %v542, 7
    %v544 = vsub.s32 %v541, %v543
    %v545 = vrot.slane %v537, %v544
    %v547 = vunpack.c.l.s4 1934713408
    %v548 = vunpack.c.0.s8 %v547
    %v549 = vlaneseq
    %v550 = vshrl.u32 %v549, 7
    %v551 = vsub.s32 %v548, %v550
    %v552 = vrot.slane %v538, %v551
    %v553 = vcombine.high %v529, 0.0
    %v554 = vcombine.high %v536, 0.0
    %v555 = vcombine.high %v545, 0.0
    %v556 = vcombine.high %v552, 0.0
    %v557 = vcombine.low %v468, %v476
    %v558 = vcombine.high %v468, %v476
    %v560 = vunpack.c.l.s4 1983009808
    %v561 = vunpack.c.0.s8 %v560
    %v562 = vlaneseq
    %v563 = vshrl.u32 %v562, 7
    %v564 = vsub.s32 %v561, %v563
    %v565 = vrot.slane %v557, %v564
    %v567 = vunpack.c.l.s4 1983009808
    %v568 = vunpack.c.0.s8 %v567
    %v569 = vlaneseq
    %v570 = vshrl.u32 %v569, 7
    %v571 = vsub.s32 %v568, %v570
    %v572 = vrot.slane %v558, %v571
    %v573 = vcombine.low %v472, %v480
    %v574 = vcombine.high %v472, %v480
    %v576 = vunpack.c.l.s4 1983009808
    %v577 = vunpack.c.0.s8 %v576
    %v578 = vlaneseq
    %v579 = vshrl.u32 %v578, 7
    %v580 = vsub.s32 %v577, %v579
    %v581 = vrot.slane %v573, %v580
    %v583 = vunpack.c.l.s4 1983009808
    %v584 = vunpack.c.0.s8 %v583
    %v585 = vlaneseq
    %v586 = vshrl.u32 %v585, 7
    %v587 = vsub.s32 %v584, %v586
    %v588 = vrot.slane %v574, %v587
    %v589 = vcombine.low %v565, %v581
    %v590 = vcombine.high %v565, %v581
    %v592 = vunpack.c.l.s4 1934713408
    %v593 = vunpack.c.0.s8 %v592
    %v594 = vlaneseq
    %v595 = vshrl.u32 %v594, 7
    %v596 = vsub.s32 %v593, %v595
    %v597 = vrot.slane %v589, %v596
    %v599 = vunpack.c.l.s4 1934713408
    %v600 = vunpack.c.0.s8 %v599
    %v601 = vlaneseq
    %v602 = vshrl.u32 %v601, 7
    %v603 = vsub.s32 %v600, %v602
    %v604 = vrot.slane %v590, %v603
    %v605 = vcombine.low %v572, %v588
    %v606 = vcombine.high %v572, %v588
    %v608 = vunpack.c.l.s4 1934713408
    %v609 = vunpack.c.0.s8 %v608
    %v610 = vlaneseq
    %v611 = vshrl.u32 %v610, 7
    %v612 = vsub.s32 %v609, %v611
    %v613 = vrot.slane %v605, %v612
    %v615 = vunpack.c.l.s4 1934713408
    %v616 = vunpack.c.0.s8 %v615
    %v617 = vlaneseq
    %v618 = vshrl.u32 %v617, 7
    %v619 = vsub.s32 %v616, %v618
    %v620 = vrot.slane %v606, %v619
    %v621 = vcombine.high %v597, 0.0
    %v622 = vcombine.high %v604, 0.0
    %v623 = vcombine.high %v613, 0.0
    %v624 = vcombine.high %v620, 0.0
    %v625 = vld [vmem:[%s3] sm:$0xff]
    %v626 = vld [vmem:[%s3 + $0x8] sm:$0xff]
    %v629 = vcombine.high %v625, %v625
    %v631 = vunpack.c.l.s4 1966171168
    %v632 = vunpack.c.0.s8 %v631
    %v633 = vlaneseq
    %v634 = vshrl.u32 %v633, 7
    %v635 = vsub.s32 %v632, %v634
    %v636 = vrot.slane %v625, %v635
    %v638 = vunpack.c.l.s4 1966171168
    %v639 = vunpack.c.0.s8 %v638
    %v640 = vlaneseq
    %v641 = vshrl.u32 %v640, 7
    %v642 = vsub.s32 %v639, %v641
    %v643 = vrot.slane %v629, %v642
    %v644 = vcombine.high %v636, %v636
    %v645 = vcombine.high %v643, %v643
    %v647 = vunpack.c.l.s4 1966171168
    %v648 = vunpack.c.0.s8 %v647
    %v649 = vlaneseq
    %v650 = vshrl.u32 %v649, 7
    %v651 = vsub.s32 %v648, %v650
    %v652 = vrot.slane %v636, %v651
    %v654 = vunpack.c.l.s4 1966171168
    %v655 = vunpack.c.0.s8 %v654
    %v656 = vlaneseq
    %v657 = vshrl.u32 %v656, 7
    %v658 = vsub.s32 %v655, %v657
    %v659 = vrot.slane %v643, %v658
    %v661 = vunpack.c.l.s4 1966171168
    %v662 = vunpack.c.0.s8 %v661
    %v663 = vlaneseq
    %v664 = vshrl.u32 %v663, 7
    %v665 = vsub.s32 %v662, %v664
    %v666 = vrot.slane %v644, %v665
    %v668 = vunpack.c.l.s4 1966171168
    %v669 = vunpack.c.0.s8 %v668
    %v670 = vlaneseq
    %v671 = vshrl.u32 %v670, 7
    %v672 = vsub.s32 %v669, %v671
    %v673 = vrot.slane %v645, %v672
    %v674 = vcombine.high %v652, %v652
    %v675 = vcombine.high %v659, %v659
    %v676 = vcombine.high %v666, %v666
    %v677 = vcombine.high %v673, %v673
    %v678 = vcombine.high %v626, %v626
    %v680 = vunpack.c.l.s4 1966171168
    %v681 = vunpack.c.0.s8 %v680
    %v682 = vlaneseq
    %v683 = vshrl.u32 %v682, 7
    %v684 = vsub.s32 %v681, %v683
    %v685 = vrot.slane %v626, %v684
    %v687 = vunpack.c.l.s4 1966171168
    %v688 = vunpack.c.0.s8 %v687
    %v689 = vlaneseq
    %v690 = vshrl.u32 %v689, 7
    %v691 = vsub.s32 %v688, %v690
    %v692 = vrot.slane %v678, %v691
    %v693 = vcombine.high %v685, %v685
    %v694 = vcombine.high %v692, %v692
    %v696 = vunpack.c.l.s4 1966171168
    %v697 = vunpack.c.0.s8 %v696
    %v698 = vlaneseq
    %v699 = vshrl.u32 %v698, 7
    %v700 = vsub.s32 %v697, %v699
    %v701 = vrot.slane %v685, %v700
    %v703 = vunpack.c.l.s4 1966171168
    %v704 = vunpack.c.0.s8 %v703
    %v705 = vlaneseq
    %v706 = vshrl.u32 %v705, 7
    %v707 = vsub.s32 %v704, %v706
    %v708 = vrot.slane %v692, %v707
    %v710 = vunpack.c.l.s4 1966171168
    %v711 = vunpack.c.0.s8 %v710
    %v712 = vlaneseq
    %v713 = vshrl.u32 %v712, 7
    %v714 = vsub.s32 %v711, %v713
    %v715 = vrot.slane %v693, %v714
    %v717 = vunpack.c.l.s4 1966171168
    %v718 = vunpack.c.0.s8 %v717
    %v719 = vlaneseq
    %v720 = vshrl.u32 %v719, 7
    %v721 = vsub.s32 %v718, %v720
    %v722 = vrot.slane %v694, %v721
    %v723 = vcombine.high %v701, %v701
    %v724 = vcombine.high %v708, %v708
    %v725 = vcombine.high %v715, %v715
    %v726 = vcombine.high %v722, %v722
    %v727 = vld [vmem:[%s4] sm:$0xff]
    %v728 = vld [vmem:[%s4 + $0x8] sm:$0xff]
    %v731 = vcombine.high %v727, %v727
    %v733 = vunpack.c.l.s4 1966171168
    %v734 = vunpack.c.0.s8 %v733
    %v735 = vlaneseq
    %v736 = vshrl.u32 %v735, 7
    %v737 = vsub.s32 %v734, %v736
    %v738 = vrot.slane %v727, %v737
    %v740 = vunpack.c.l.s4 1966171168
    %v741 = vunpack.c.0.s8 %v740
    %v742 = vlaneseq
    %v743 = vshrl.u32 %v742, 7
    %v744 = vsub.s32 %v741, %v743
    %v745 = vrot.slane %v731, %v744
    %v746 = vcombine.high %v738, %v738
    %v747 = vcombine.high %v745, %v745
    %v749 = vunpack.c.l.s4 1966171168
    %v750 = vunpack.c.0.s8 %v749
    %v751 = vlaneseq
    %v752 = vshrl.u32 %v751, 7
    %v753 = vsub.s32 %v750, %v752
    %v754 = vrot.slane %v738, %v753
    %v756 = vunpack.c.l.s4 1966171168
    %v757 = vunpack.c.0.s8 %v756
    %v758 = vlaneseq
    %v759 = vshrl.u32 %v758, 7
    %v760 = vsub.s32 %v757, %v759
    %v761 = vrot.slane %v745, %v760
    %v763 = vunpack.c.l.s4 1966171168
    %v764 = vunpack.c.0.s8 %v763
    %v765 = vlaneseq
    %v766 = vshrl.u32 %v765, 7
    %v767 = vsub.s32 %v764, %v766
    %v768 = vrot.slane %v746, %v767
    %v770 = vunpack.c.l.s4 1966171168
    %v771 = vunpack.c.0.s8 %v770
    %v772 = vlaneseq
    %v773 = vshrl.u32 %v772, 7
    %v774 = vsub.s32 %v771, %v773
    %v775 = vrot.slane %v747, %v774
    %v776 = vcombine.high %v754, %v754
    %v777 = vcombine.high %v761, %v761
    %v778 = vcombine.high %v768, %v768
    %v779 = vcombine.high %v775, %v775
    %v780 = vcombine.high %v728, %v728
    %v782 = vunpack.c.l.s4 1966171168
    %v783 = vunpack.c.0.s8 %v782
    %v784 = vlaneseq
    %v785 = vshrl.u32 %v784, 7
    %v786 = vsub.s32 %v783, %v785
    %v787 = vrot.slane %v728, %v786
    %v789 = vunpack.c.l.s4 1966171168
    %v790 = vunpack.c.0.s8 %v789
    %v791 = vlaneseq
    %v792 = vshrl.u32 %v791, 7
    %v793 = vsub.s32 %v790, %v792
    %v794 = vrot.slane %v780, %v793
    %v795 = vcombine.high %v787, %v787
    %v796 = vcombine.high %v794, %v794
    %v798 = vunpack.c.l.s4 1966171168
    %v799 = vunpack.c.0.s8 %v798
    %v800 = vlaneseq
    %v801 = vshrl.u32 %v800, 7
    %v802 = vsub.s32 %v799, %v801
    %v803 = vrot.slane %v787, %v802
    %v805 = vunpack.c.l.s4 1966171168
    %v806 = vunpack.c.0.s8 %v805
    %v807 = vlaneseq
    %v808 = vshrl.u32 %v807, 7
    %v809 = vsub.s32 %v806, %v808
    %v810 = vrot.slane %v794, %v809
    %v812 = vunpack.c.l.s4 1966171168
    %v813 = vunpack.c.0.s8 %v812
    %v814 = vlaneseq
    %v815 = vshrl.u32 %v814, 7
    %v816 = vsub.s32 %v813, %v815
    %v817 = vrot.slane %v795, %v816
    %v819 = vunpack.c.l.s4 1966171168
    %v820 = vunpack.c.0.s8 %v819
    %v821 = vlaneseq
    %v822 = vshrl.u32 %v821, 7
    %v823 = vsub.s32 %v820, %v822
    %v824 = vrot.slane %v796, %v823
    %v825 = vcombine.high %v803, %v803
    %v826 = vcombine.high %v810, %v810
    %v827 = vcombine.high %v817, %v817
    %v828 = vcombine.high %v824, %v824
    %v829 = vmul.f32 %v209, %v209
    %v830 = vmul.f32 %v233, %v233
    %v831 = vmul.f32 %v216, %v216
    %v832 = vmul.f32 %v234, %v234
    %v833 = vmul.f32 %v225, %v225
    %v834 = vmul.f32 %v235, %v235
    %v835 = vmul.f32 %v232, %v232
    %v836 = vmul.f32 %v236, %v236
    %v837 = vmul.f32 %v277, %v277
    %v838 = vmul.f32 %v301, %v301
    %v839 = vmul.f32 %v284, %v284
    %v840 = vmul.f32 %v302, %v302
    %v841 = vmul.f32 %v293, %v293
    %v842 = vmul.f32 %v303, %v303
    %v843 = vmul.f32 %v300, %v300
    %v844 = vmul.f32 %v304, %v304
    %vm845 = vcmask 60416
    %v846 = vsel %vm845, %v829, 0.0
    %847 = vadd.xlane.f32.xlu0 %v846
    %v848 = vpop.xlane.xlu0 %847
    %v849 = vsel %vm845, %v830, 0.0
    %850 = vadd.xlane.f32.xlu0 %v849
    %v851 = vpop.xlane.xlu0 %850
    %v852 = vsel %vm845, %v831, 0.0
    %853 = vadd.xlane.f32.xlu0 %v852
    %v854 = vpop.xlane.xlu0 %853
    %v855 = vsel %vm845, %v832, 0.0
    %856 = vadd.xlane.f32.xlu0 %v855
    %v857 = vpop.xlane.xlu0 %856
    %v858 = vsel %vm845, %v833, 0.0
    %859 = vadd.xlane.f32.xlu0 %v858
    %v860 = vpop.xlane.xlu0 %859
    %v861 = vsel %vm845, %v834, 0.0
    %862 = vadd.xlane.f32.xlu0 %v861
    %v863 = vpop.xlane.xlu0 %862
    %v864 = vsel %vm845, %v835, 0.0
    %865 = vadd.xlane.f32.xlu0 %v864
    %v866 = vpop.xlane.xlu0 %865
    %v867 = vsel %vm845, %v836, 0.0
    %868 = vadd.xlane.f32.xlu0 %v867
    %v869 = vpop.xlane.xlu0 %868
    %v870 = vsel %vm845, %v837, 0.0
    %871 = vadd.xlane.f32.xlu0 %v870
    %v872 = vpop.xlane.xlu0 %871
    %v873 = vsel %vm845, %v838, 0.0
    %874 = vadd.xlane.f32.xlu0 %v873
    %v875 = vpop.xlane.xlu0 %874
    %v876 = vsel %vm845, %v839, 0.0
    %877 = vadd.xlane.f32.xlu0 %v876
    %v878 = vpop.xlane.xlu0 %877
    %v879 = vsel %vm845, %v840, 0.0
    %880 = vadd.xlane.f32.xlu0 %v879
    %v881 = vpop.xlane.xlu0 %880
    %v882 = vsel %vm845, %v841, 0.0
    %883 = vadd.xlane.f32.xlu0 %v882
    %v884 = vpop.xlane.xlu0 %883
    %v885 = vsel %vm845, %v842, 0.0
    %886 = vadd.xlane.f32.xlu0 %v885
    %v887 = vpop.xlane.xlu0 %886
    %v888 = vsel %vm845, %v843, 0.0
    %889 = vadd.xlane.f32.xlu0 %v888
    %v890 = vpop.xlane.xlu0 %889
    %v891 = vsel %vm845, %v844, 0.0
    %892 = vadd.xlane.f32.xlu0 %v891
    %v893 = vpop.xlane.xlu0 %892
    %v894 = vrcp.pop 8.0
    %v895 = vmul.f32 %v848, %v894
    %v896 = vmul.f32 %v851, %v894
    %v897 = vmul.f32 %v854, %v894
    %v898 = vmul.f32 %v857, %v894
    %v899 = vmul.f32 %v860, %v894
    %v900 = vmul.f32 %v863, %v894
    %v901 = vmul.f32 %v866, %v894
    %v902 = vmul.f32 %v869, %v894
    %v903 = vmul.f32 %v872, %v894
    %v904 = vmul.f32 %v875, %v894
    %v905 = vmul.f32 %v878, %v894
    %v906 = vmul.f32 %v881, %v894
    %v907 = vmul.f32 %v884, %v894
    %v908 = vmul.f32 %v887, %v894
    %v909 = vmul.f32 %v890, %v894
    %v910 = vmul.f32 %v893, %v894
    %v911 = vadd.f32 %v895, 1e-06
    %v912 = vadd.f32 %v896, 1e-06
    %v913 = vadd.f32 %v897, 1e-06
    %v914 = vadd.f32 %v898, 1e-06
    %v915 = vadd.f32 %v899, 1e-06
    %v916 = vadd.f32 %v900, 1e-06
    %v917 = vadd.f32 %v901, 1e-06
    %v918 = vadd.f32 %v902, 1e-06
    %v919 = vadd.f32 %v903, 1e-06
    %v920 = vadd.f32 %v904, 1e-06
    %v921 = vadd.f32 %v905, 1e-06
    %v922 = vadd.f32 %v906, 1e-06
    %v923 = vadd.f32 %v907, 1e-06
    %v924 = vadd.f32 %v908, 1e-06
    %v925 = vadd.f32 %v909, 1e-06
    %v926 = vadd.f32 %v910, 1e-06
    %v927 = vrsqrt.pop %v911
    %v928 = vrsqrt.pop %v912
    %v929 = vrsqrt.pop %v913
    %v930 = vrsqrt.pop %v914
    %v931 = vrsqrt.pop %v915
    %v932 = vrsqrt.pop %v916
    %v933 = vrsqrt.pop %v917
    %v934 = vrsqrt.pop %v918
    %v935 = vrsqrt.pop %v919
    %v936 = vrsqrt.pop %v920
    %v937 = vrsqrt.pop %v921
    %v938 = vrsqrt.pop %v922
    %v939 = vrsqrt.pop %v923
    %v940 = vrsqrt.pop %v924
    %v941 = vrsqrt.pop %v925
    %v942 = vrsqrt.pop %v926
    %v943 = vmul.f32 %v209, %v927
    %v944 = vmul.f32 %v233, %v928
    %v945 = vmul.f32 %v216, %v929
    %v946 = vmul.f32 %v234, %v930
    %v947 = vmul.f32 %v225, %v931
    %v948 = vmul.f32 %v235, %v932
    %v949 = vmul.f32 %v232, %v933
    %v950 = vmul.f32 %v236, %v934
    %v951 = vmul.f32 %v277, %v935
    %v952 = vmul.f32 %v301, %v936
    %v953 = vmul.f32 %v284, %v937
    %v954 = vmul.f32 %v302, %v938
    %v955 = vmul.f32 %v293, %v939
    %v956 = vmul.f32 %v303, %v940
    %v957 = vmul.f32 %v300, %v941
    %v958 = vmul.f32 %v304, %v942
    %v959 = vld [vmem:[%s5] sm:$0x1]
    %v961 = vlaneseq
    %v962 = vshrl.u32 %v961, 7
    %v963 = vsub.s32 0, %v962
    %v964 = vrot.slane %v959, %v963
    %v966 = vmul.f32 %v943, %v964
    %v967 = vmul.f32 %v944, %v964
    %v968 = vmul.f32 %v945, %v964
    %v969 = vmul.f32 %v946, %v964
    %v970 = vmul.f32 %v947, %v964
    %v971 = vmul.f32 %v948, %v964
    %v972 = vmul.f32 %v949, %v964
    %v973 = vmul.f32 %v950, %v964
    %v974 = vmul.f32 %v951, %v964
    %v975 = vmul.f32 %v952, %v964
    %v976 = vmul.f32 %v953, %v964
    %v977 = vmul.f32 %v954, %v964
    %v978 = vmul.f32 %v955, %v964
    %v979 = vmul.f32 %v956, %v964
    %v980 = vmul.f32 %v957, %v964
    %v981 = vmul.f32 %v958, %v964
    %v982 = vsub.f32 0.0, %v966
    %v983 = vsub.f32 0.0, %v967
    %v984 = vsub.f32 0.0, %v968
    %v985 = vsub.f32 0.0, %v969
    %v986 = vsub.f32 0.0, %v970
    %v987 = vsub.f32 0.0, %v971
    %v988 = vsub.f32 0.0, %v972
    %v989 = vsub.f32 0.0, %v973
    %v990 = vsub.f32 0.0, %v974
    %v991 = vsub.f32 0.0, %v975
    %v992 = vsub.f32 0.0, %v976
    %v993 = vsub.f32 0.0, %v977
    %v994 = vsub.f32 0.0, %v978
    %v995 = vsub.f32 0.0, %v979
    %v996 = vsub.f32 0.0, %v980
    %v997 = vsub.f32 0.0, %v981
    %1014 = vrot.lane.b32.xlu0 %v982, 124
    %v1015 = vpop.permute.xlu0 %1014
    %1016 = vrot.lane.b32.xlu0 %v983, 124
    %v1017 = vpop.permute.xlu0 %1016
    %1018 = vrot.lane.b32.xlu0 %v984, 124
    %v1019 = vpop.permute.xlu0 %1018
    %1020 = vrot.lane.b32.xlu0 %v985, 124
    %v1021 = vpop.permute.xlu0 %1020
    %1022 = vrot.lane.b32.xlu0 %v986, 124
    %v1023 = vpop.permute.xlu0 %1022
    %1024 = vrot.lane.b32.xlu0 %v987, 124
    %v1025 = vpop.permute.xlu0 %1024
    %1026 = vrot.lane.b32.xlu0 %v988, 124
    %v1027 = vpop.permute.xlu0 %1026
    %1028 = vrot.lane.b32.xlu0 %v989, 124
    %v1029 = vpop.permute.xlu0 %1028
    %1030 = vrot.lane.b32.xlu0 %v990, 124
    %v1031 = vpop.permute.xlu0 %1030
    %1032 = vrot.lane.b32.xlu0 %v991, 124
    %v1033 = vpop.permute.xlu0 %1032
    %1034 = vrot.lane.b32.xlu0 %v992, 124
    %v1035 = vpop.permute.xlu0 %1034
    %1036 = vrot.lane.b32.xlu0 %v993, 124
    %v1037 = vpop.permute.xlu0 %1036
    %1038 = vrot.lane.b32.xlu0 %v994, 124
    %v1039 = vpop.permute.xlu0 %1038
    %1040 = vrot.lane.b32.xlu0 %v995, 124
    %v1041 = vpop.permute.xlu0 %1040
    %1042 = vrot.lane.b32.xlu0 %v996, 124
    %v1043 = vpop.permute.xlu0 %1042
    %1044 = vrot.lane.b32.xlu0 %v997, 124
    %v1045 = vpop.permute.xlu0 %1044
    %1078 = vrot.lane.b32.xlu0 %v966, 4
    %v1079 = vpop.permute.xlu0 %1078
    %1080 = vrot.lane.b32.xlu0 %v967, 4
    %v1081 = vpop.permute.xlu0 %1080
    %1082 = vrot.lane.b32.xlu0 %v968, 4
    %v1083 = vpop.permute.xlu0 %1082
    %1084 = vrot.lane.b32.xlu0 %v969, 4
    %v1085 = vpop.permute.xlu0 %1084
    %1086 = vrot.lane.b32.xlu0 %v970, 4
    %v1087 = vpop.permute.xlu0 %1086
    %1088 = vrot.lane.b32.xlu0 %v971, 4
    %v1089 = vpop.permute.xlu0 %1088
    %1090 = vrot.lane.b32.xlu0 %v972, 4
    %v1091 = vpop.permute.xlu0 %1090
    %1092 = vrot.lane.b32.xlu0 %v973, 4
    %v1093 = vpop.permute.xlu0 %1092
    %1094 = vrot.lane.b32.xlu0 %v974, 4
    %v1095 = vpop.permute.xlu0 %1094
    %1096 = vrot.lane.b32.xlu0 %v975, 4
    %v1097 = vpop.permute.xlu0 %1096
    %1098 = vrot.lane.b32.xlu0 %v976, 4
    %v1099 = vpop.permute.xlu0 %1098
    %1100 = vrot.lane.b32.xlu0 %v977, 4
    %v1101 = vpop.permute.xlu0 %1100
    %1102 = vrot.lane.b32.xlu0 %v978, 4
    %v1103 = vpop.permute.xlu0 %1102
    %1104 = vrot.lane.b32.xlu0 %v979, 4
    %v1105 = vpop.permute.xlu0 %1104
    %1106 = vrot.lane.b32.xlu0 %v980, 4
    %v1107 = vpop.permute.xlu0 %1106
    %1108 = vrot.lane.b32.xlu0 %v981, 4
    %v1109 = vpop.permute.xlu0 %1108
    %vm1126 = vcmask 31744
    %v1127 = vsel %vm1126, %v1015, %v1079
    %v1128 = vsel %vm1126, %v1017, %v1081
    %v1129 = vsel %vm1126, %v1019, %v1083
    %v1130 = vsel %vm1126, %v1021, %v1085
    %v1131 = vsel %vm1126, %v1023, %v1087
    %v1132 = vsel %vm1126, %v1025, %v1089
    %v1133 = vsel %vm1126, %v1027, %v1091
    %v1134 = vsel %vm1126, %v1029, %v1093
    %v1135 = vsel %vm1126, %v1031, %v1095
    %v1136 = vsel %vm1126, %v1033, %v1097
    %v1137 = vsel %vm1126, %v1035, %v1099
    %v1138 = vsel %vm1126, %v1037, %v1101
    %v1139 = vsel %vm1126, %v1039, %v1103
    %v1140 = vsel %vm1126, %v1041, %v1105
    %v1141 = vsel %vm1126, %v1043, %v1107
    %v1142 = vsel %vm1126, %v1045, %v1109
    %v1143 = vlaneseq
    %v1144 = vshrl.u32 %v1143, 7
    %v1145 = vsub.s32 0, %v1144
    %v1146 = vrot.slane %v652, %v1145
    %v1147 = vlaneseq
    %v1148 = vshrl.u32 %v1147, 7
    %v1149 = vsub.s32 0, %v1148
    %v1150 = vrot.slane %v666, %v1149
    %v1151 = vlaneseq
    %v1152 = vshrl.u32 %v1151, 7
    %v1153 = vsub.s32 0, %v1152
    %v1154 = vrot.slane %v674, %v1153
    %v1155 = vlaneseq
    %v1156 = vshrl.u32 %v1155, 7
    %v1157 = vsub.s32 0, %v1156
    %v1158 = vrot.slane %v676, %v1157
    %v1159 = vlaneseq
    %v1160 = vshrl.u32 %v1159, 7
    %v1161 = vsub.s32 0, %v1160
    %v1162 = vrot.slane %v659, %v1161
    %v1163 = vlaneseq
    %v1164 = vshrl.u32 %v1163, 7
    %v1165 = vsub.s32 0, %v1164
    %v1166 = vrot.slane %v673, %v1165
    %v1167 = vlaneseq
    %v1168 = vshrl.u32 %v1167, 7
    %v1169 = vsub.s32 0, %v1168
    %v1170 = vrot.slane %v675, %v1169
    %v1171 = vlaneseq
    %v1172 = vshrl.u32 %v1171, 7
    %v1173 = vsub.s32 0, %v1172
    %v1174 = vrot.slane %v677, %v1173
    %v1175 = vlaneseq
    %v1176 = vshrl.u32 %v1175, 7
    %v1177 = vsub.s32 0, %v1176
    %v1178 = vrot.slane %v701, %v1177
    %v1179 = vlaneseq
    %v1180 = vshrl.u32 %v1179, 7
    %v1181 = vsub.s32 0, %v1180
    %v1182 = vrot.slane %v715, %v1181
    %v1183 = vlaneseq
    %v1184 = vshrl.u32 %v1183, 7
    %v1185 = vsub.s32 0, %v1184
    %v1186 = vrot.slane %v723, %v1185
    %v1187 = vlaneseq
    %v1188 = vshrl.u32 %v1187, 7
    %v1189 = vsub.s32 0, %v1188
    %v1190 = vrot.slane %v725, %v1189
    %v1191 = vlaneseq
    %v1192 = vshrl.u32 %v1191, 7
    %v1193 = vsub.s32 0, %v1192
    %v1194 = vrot.slane %v708, %v1193
    %v1195 = vlaneseq
    %v1196 = vshrl.u32 %v1195, 7
    %v1197 = vsub.s32 0, %v1196
    %v1198 = vrot.slane %v722, %v1197
    %v1199 = vlaneseq
    %v1200 = vshrl.u32 %v1199, 7
    %v1201 = vsub.s32 0, %v1200
    %v1202 = vrot.slane %v724, %v1201
    %v1203 = vlaneseq
    %v1204 = vshrl.u32 %v1203, 7
    %v1205 = vsub.s32 0, %v1204
    %v1206 = vrot.slane %v726, %v1205
    %v1223 = vmul.f32 %v966, %v1146
    %v1224 = vmul.f32 %v967, %v1150
    %v1225 = vmul.f32 %v968, %v1154
    %v1226 = vmul.f32 %v969, %v1158
    %v1227 = vmul.f32 %v970, %v1162
    %v1228 = vmul.f32 %v971, %v1166
    %v1229 = vmul.f32 %v972, %v1170
    %v1230 = vmul.f32 %v973, %v1174
    %v1231 = vmul.f32 %v974, %v1178
    %v1232 = vmul.f32 %v975, %v1182
    %v1233 = vmul.f32 %v976, %v1186
    %v1234 = vmul.f32 %v977, %v1190
    %v1235 = vmul.f32 %v978, %v1194
    %v1236 = vmul.f32 %v979, %v1198
    %v1237 = vmul.f32 %v980, %v1202
    %v1238 = vmul.f32 %v981, %v1206
    %v1239 = vlaneseq
    %v1240 = vshrl.u32 %v1239, 7
    %v1241 = vsub.s32 0, %v1240
    %v1242 = vrot.slane %v754, %v1241
    %v1243 = vlaneseq
    %v1244 = vshrl.u32 %v1243, 7
    %v1245 = vsub.s32 0, %v1244
    %v1246 = vrot.slane %v768, %v1245
    %v1247 = vlaneseq
    %v1248 = vshrl.u32 %v1247, 7
    %v1249 = vsub.s32 0, %v1248
    %v1250 = vrot.slane %v776, %v1249
    %v1251 = vlaneseq
    %v1252 = vshrl.u32 %v1251, 7
    %v1253 = vsub.s32 0, %v1252
    %v1254 = vrot.slane %v778, %v1253
    %v1255 = vlaneseq
    %v1256 = vshrl.u32 %v1255, 7
    %v1257 = vsub.s32 0, %v1256
    %v1258 = vrot.slane %v761, %v1257
    %v1259 = vlaneseq
    %v1260 = vshrl.u32 %v1259, 7
    %v1261 = vsub.s32 0, %v1260
    %v1262 = vrot.slane %v775, %v1261
    %v1263 = vlaneseq
    %v1264 = vshrl.u32 %v1263, 7
    %v1265 = vsub.s32 0, %v1264
    %v1266 = vrot.slane %v777, %v1265
    %v1267 = vlaneseq
    %v1268 = vshrl.u32 %v1267, 7
    %v1269 = vsub.s32 0, %v1268
    %v1270 = vrot.slane %v779, %v1269
    %v1271 = vlaneseq
    %v1272 = vshrl.u32 %v1271, 7
    %v1273 = vsub.s32 0, %v1272
    %v1274 = vrot.slane %v803, %v1273
    %v1275 = vlaneseq
    %v1276 = vshrl.u32 %v1275, 7
    %v1277 = vsub.s32 0, %v1276
    %v1278 = vrot.slane %v817, %v1277
    %v1279 = vlaneseq
    %v1280 = vshrl.u32 %v1279, 7
    %v1281 = vsub.s32 0, %v1280
    %v1282 = vrot.slane %v825, %v1281
    %v1283 = vlaneseq
    %v1284 = vshrl.u32 %v1283, 7
    %v1285 = vsub.s32 0, %v1284
    %v1286 = vrot.slane %v827, %v1285
    %v1287 = vlaneseq
    %v1288 = vshrl.u32 %v1287, 7
    %v1289 = vsub.s32 0, %v1288
    %v1290 = vrot.slane %v810, %v1289
    %v1291 = vlaneseq
    %v1292 = vshrl.u32 %v1291, 7
    %v1293 = vsub.s32 0, %v1292
    %v1294 = vrot.slane %v824, %v1293
    %v1295 = vlaneseq
    %v1296 = vshrl.u32 %v1295, 7
    %v1297 = vsub.s32 0, %v1296
    %v1298 = vrot.slane %v826, %v1297
    %v1299 = vlaneseq
    %v1300 = vshrl.u32 %v1299, 7
    %v1301 = vsub.s32 0, %v1300
    %v1302 = vrot.slane %v828, %v1301
    %v1319 = vmul.f32 %v1127, %v1242
    %v1320 = vmul.f32 %v1128, %v1246
    %v1321 = vmul.f32 %v1129, %v1250
    %v1322 = vmul.f32 %v1130, %v1254
    %v1323 = vmul.f32 %v1131, %v1258
    %v1324 = vmul.f32 %v1132, %v1262
    %v1325 = vmul.f32 %v1133, %v1266
    %v1326 = vmul.f32 %v1134, %v1270
    %v1327 = vmul.f32 %v1135, %v1274
    %v1328 = vmul.f32 %v1136, %v1278
    %v1329 = vmul.f32 %v1137, %v1282
    %v1330 = vmul.f32 %v1138, %v1286
    %v1331 = vmul.f32 %v1139, %v1290
    %v1332 = vmul.f32 %v1140, %v1294
    %v1333 = vmul.f32 %v1141, %v1298
    %v1334 = vmul.f32 %v1142, %v1302
    %v1335 = vadd.f32 %v1223, %v1319
    %v1336 = vadd.f32 %v1224, %v1320
    %v1337 = vadd.f32 %v1225, %v1321
    %v1338 = vadd.f32 %v1226, %v1322
    %v1339 = vadd.f32 %v1227, %v1323
    %v1340 = vadd.f32 %v1228, %v1324
    %v1341 = vadd.f32 %v1229, %v1325
    %v1342 = vadd.f32 %v1230, %v1326
    %v1343 = vadd.f32 %v1231, %v1327
    %v1344 = vadd.f32 %v1232, %v1328
    %v1345 = vadd.f32 %v1233, %v1329
    %v1346 = vadd.f32 %v1234, %v1330
    %v1347 = vadd.f32 %v1235, %v1331
    %v1348 = vadd.f32 %v1236, %v1332
    %v1349 = vadd.f32 %v1237, %v1333
    %v1350 = vadd.f32 %v1238, %v1334
    %v1351 = vmul.f32 %v369, %v369
    %v1352 = vmul.f32 %v393, %v393
    %v1353 = vmul.f32 %v376, %v376
    %v1354 = vmul.f32 %v394, %v394
    %v1355 = vmul.f32 %v385, %v385
    %v1356 = vmul.f32 %v395, %v395
    %v1357 = vmul.f32 %v392, %v392
    %v1358 = vmul.f32 %v396, %v396
    %v1359 = vmul.f32 %v437, %v437
    %v1360 = vmul.f32 %v461, %v461
    %v1361 = vmul.f32 %v444, %v444
    %v1362 = vmul.f32 %v462, %v462
    %v1363 = vmul.f32 %v453, %v453
    %v1364 = vmul.f32 %v463, %v463
    %v1365 = vmul.f32 %v460, %v460
    %v1366 = vmul.f32 %v464, %v464
    %v1367 = vsel %vm845, %v1351, 0.0
    %1368 = vadd.xlane.f32.xlu0 %v1367
    %v1369 = vpop.xlane.xlu0 %1368
    %v1370 = vsel %vm845, %v1352, 0.0
    %1371 = vadd.xlane.f32.xlu0 %v1370
    %v1372 = vpop.xlane.xlu0 %1371
    %v1373 = vsel %vm845, %v1353, 0.0
    %1374 = vadd.xlane.f32.xlu0 %v1373
    %v1375 = vpop.xlane.xlu0 %1374
    %v1376 = vsel %vm845, %v1354, 0.0
    %1377 = vadd.xlane.f32.xlu0 %v1376
    %v1378 = vpop.xlane.xlu0 %1377
    %v1379 = vsel %vm845, %v1355, 0.0
    %1380 = vadd.xlane.f32.xlu0 %v1379
    %v1381 = vpop.xlane.xlu0 %1380
    %v1382 = vsel %vm845, %v1356, 0.0
    %1383 = vadd.xlane.f32.xlu0 %v1382
    %v1384 = vpop.xlane.xlu0 %1383
    %v1385 = vsel %vm845, %v1357, 0.0
    %1386 = vadd.xlane.f32.xlu0 %v1385
    %v1387 = vpop.xlane.xlu0 %1386
    %v1388 = vsel %vm845, %v1358, 0.0
    %1389 = vadd.xlane.f32.xlu0 %v1388
    %v1390 = vpop.xlane.xlu0 %1389
    %v1391 = vsel %vm845, %v1359, 0.0
    %1392 = vadd.xlane.f32.xlu0 %v1391
    %v1393 = vpop.xlane.xlu0 %1392
    %v1394 = vsel %vm845, %v1360, 0.0
    %1395 = vadd.xlane.f32.xlu0 %v1394
    %v1396 = vpop.xlane.xlu0 %1395
    %v1397 = vsel %vm845, %v1361, 0.0
    %1398 = vadd.xlane.f32.xlu0 %v1397
    %v1399 = vpop.xlane.xlu0 %1398
    %v1400 = vsel %vm845, %v1362, 0.0
    %1401 = vadd.xlane.f32.xlu0 %v1400
    %v1402 = vpop.xlane.xlu0 %1401
    %v1403 = vsel %vm845, %v1363, 0.0
    %1404 = vadd.xlane.f32.xlu0 %v1403
    %v1405 = vpop.xlane.xlu0 %1404
    %v1406 = vsel %vm845, %v1364, 0.0
    %1407 = vadd.xlane.f32.xlu0 %v1406
    %v1408 = vpop.xlane.xlu0 %1407
    %v1409 = vsel %vm845, %v1365, 0.0
    %1410 = vadd.xlane.f32.xlu0 %v1409
    %v1411 = vpop.xlane.xlu0 %1410
    %v1412 = vsel %vm845, %v1366, 0.0
    %1413 = vadd.xlane.f32.xlu0 %v1412
    %v1414 = vpop.xlane.xlu0 %1413
    %v1415 = vmul.f32 %v1369, %v894
    %v1416 = vmul.f32 %v1372, %v894
    %v1417 = vmul.f32 %v1375, %v894
    %v1418 = vmul.f32 %v1378, %v894
    %v1419 = vmul.f32 %v1381, %v894
    %v1420 = vmul.f32 %v1384, %v894
    %v1421 = vmul.f32 %v1387, %v894
    %v1422 = vmul.f32 %v1390, %v894
    %v1423 = vmul.f32 %v1393, %v894
    %v1424 = vmul.f32 %v1396, %v894
    %v1425 = vmul.f32 %v1399, %v894
    %v1426 = vmul.f32 %v1402, %v894
    %v1427 = vmul.f32 %v1405, %v894
    %v1428 = vmul.f32 %v1408, %v894
    %v1429 = vmul.f32 %v1411, %v894
    %v1430 = vmul.f32 %v1414, %v894
    %v1431 = vadd.f32 %v1415, 1e-06
    %v1432 = vadd.f32 %v1416, 1e-06
    %v1433 = vadd.f32 %v1417, 1e-06
    %v1434 = vadd.f32 %v1418, 1e-06
    %v1435 = vadd.f32 %v1419, 1e-06
    %v1436 = vadd.f32 %v1420, 1e-06
    %v1437 = vadd.f32 %v1421, 1e-06
    %v1438 = vadd.f32 %v1422, 1e-06
    %v1439 = vadd.f32 %v1423, 1e-06
    %v1440 = vadd.f32 %v1424, 1e-06
    %v1441 = vadd.f32 %v1425, 1e-06
    %v1442 = vadd.f32 %v1426, 1e-06
    %v1443 = vadd.f32 %v1427, 1e-06
    %v1444 = vadd.f32 %v1428, 1e-06
    %v1445 = vadd.f32 %v1429, 1e-06
    %v1446 = vadd.f32 %v1430, 1e-06
    %v1447 = vrsqrt.pop %v1431
    %v1448 = vrsqrt.pop %v1432
    %v1449 = vrsqrt.pop %v1433
    %v1450 = vrsqrt.pop %v1434
    %v1451 = vrsqrt.pop %v1435
    %v1452 = vrsqrt.pop %v1436
    %v1453 = vrsqrt.pop %v1437
    %v1454 = vrsqrt.pop %v1438
    %v1455 = vrsqrt.pop %v1439
    %v1456 = vrsqrt.pop %v1440
    %v1457 = vrsqrt.pop %v1441
    %v1458 = vrsqrt.pop %v1442
    %v1459 = vrsqrt.pop %v1443
    %v1460 = vrsqrt.pop %v1444
    %v1461 = vrsqrt.pop %v1445
    %v1462 = vrsqrt.pop %v1446
    %v1463 = vmul.f32 %v369, %v1447
    %v1464 = vmul.f32 %v393, %v1448
    %v1465 = vmul.f32 %v376, %v1449
    %v1466 = vmul.f32 %v394, %v1450
    %v1467 = vmul.f32 %v385, %v1451
    %v1468 = vmul.f32 %v395, %v1452
    %v1469 = vmul.f32 %v392, %v1453
    %v1470 = vmul.f32 %v396, %v1454
    %v1471 = vmul.f32 %v437, %v1455
    %v1472 = vmul.f32 %v461, %v1456
    %v1473 = vmul.f32 %v444, %v1457
    %v1474 = vmul.f32 %v462, %v1458
    %v1475 = vmul.f32 %v453, %v1459
    %v1476 = vmul.f32 %v463, %v1460
    %v1477 = vmul.f32 %v460, %v1461
    %v1478 = vmul.f32 %v464, %v1462
    %v1479 = vld [vmem:[%s6] sm:$0x1]
    %v1481 = vlaneseq
    %v1482 = vshrl.u32 %v1481, 7
    %v1483 = vsub.s32 0, %v1482
    %v1484 = vrot.slane %v1479, %v1483
    %v1486 = vmul.f32 %v1463, %v1484
    %v1487 = vmul.f32 %v1464, %v1484
    %v1488 = vmul.f32 %v1465, %v1484
    %v1489 = vmul.f32 %v1466, %v1484
    %v1490 = vmul.f32 %v1467, %v1484
    %v1491 = vmul.f32 %v1468, %v1484
    %v1492 = vmul.f32 %v1469, %v1484
    %v1493 = vmul.f32 %v1470, %v1484
    %v1494 = vmul.f32 %v1471, %v1484
    %v1495 = vmul.f32 %v1472, %v1484
    %v1496 = vmul.f32 %v1473, %v1484
    %v1497 = vmul.f32 %v1474, %v1484
    %v1498 = vmul.f32 %v1475, %v1484
    %v1499 = vmul.f32 %v1476, %v1484
    %v1500 = vmul.f32 %v1477, %v1484
    %v1501 = vmul.f32 %v1478, %v1484
    %v1502 = vsub.f32 0.0, %v1486
    %v1503 = vsub.f32 0.0, %v1487
    %v1504 = vsub.f32 0.0, %v1488
    %v1505 = vsub.f32 0.0, %v1489
    %v1506 = vsub.f32 0.0, %v1490
    %v1507 = vsub.f32 0.0, %v1491
    %v1508 = vsub.f32 0.0, %v1492
    %v1509 = vsub.f32 0.0, %v1493
    %v1510 = vsub.f32 0.0, %v1494
    %v1511 = vsub.f32 0.0, %v1495
    %v1512 = vsub.f32 0.0, %v1496
    %v1513 = vsub.f32 0.0, %v1497
    %v1514 = vsub.f32 0.0, %v1498
    %v1515 = vsub.f32 0.0, %v1499
    %v1516 = vsub.f32 0.0, %v1500
    %v1517 = vsub.f32 0.0, %v1501
    %1534 = vrot.lane.b32.xlu0 %v1502, 124
    %v1535 = vpop.permute.xlu0 %1534
    %1536 = vrot.lane.b32.xlu0 %v1503, 124
    %v1537 = vpop.permute.xlu0 %1536
    %1538 = vrot.lane.b32.xlu0 %v1504, 124
    %v1539 = vpop.permute.xlu0 %1538
    %1540 = vrot.lane.b32.xlu0 %v1505, 124
    %v1541 = vpop.permute.xlu0 %1540
    %1542 = vrot.lane.b32.xlu0 %v1506, 124
    %v1543 = vpop.permute.xlu0 %1542
    %1544 = vrot.lane.b32.xlu0 %v1507, 124
    %v1545 = vpop.permute.xlu0 %1544
    %1546 = vrot.lane.b32.xlu0 %v1508, 124
    %v1547 = vpop.permute.xlu0 %1546
    %1548 = vrot.lane.b32.xlu0 %v1509, 124
    %v1549 = vpop.permute.xlu0 %1548
    %1550 = vrot.lane.b32.xlu0 %v1510, 124
    %v1551 = vpop.permute.xlu0 %1550
    %1552 = vrot.lane.b32.xlu0 %v1511, 124
    %v1553 = vpop.permute.xlu0 %1552
    %1554 = vrot.lane.b32.xlu0 %v1512, 124
    %v1555 = vpop.permute.xlu0 %1554
    %1556 = vrot.lane.b32.xlu0 %v1513, 124
    %v1557 = vpop.permute.xlu0 %1556
    %1558 = vrot.lane.b32.xlu0 %v1514, 124
    %v1559 = vpop.permute.xlu0 %1558
    %1560 = vrot.lane.b32.xlu0 %v1515, 124
    %v1561 = vpop.permute.xlu0 %1560
    %1562 = vrot.lane.b32.xlu0 %v1516, 124
    %v1563 = vpop.permute.xlu0 %1562
    %1564 = vrot.lane.b32.xlu0 %v1517, 124
    %v1565 = vpop.permute.xlu0 %1564
    %1598 = vrot.lane.b32.xlu0 %v1486, 4
    %v1599 = vpop.permute.xlu0 %1598
    %1600 = vrot.lane.b32.xlu0 %v1487, 4
    %v1601 = vpop.permute.xlu0 %1600
    %1602 = vrot.lane.b32.xlu0 %v1488, 4
    %v1603 = vpop.permute.xlu0 %1602
    %1604 = vrot.lane.b32.xlu0 %v1489, 4
    %v1605 = vpop.permute.xlu0 %1604
    %1606 = vrot.lane.b32.xlu0 %v1490, 4
    %v1607 = vpop.permute.xlu0 %1606
    %1608 = vrot.lane.b32.xlu0 %v1491, 4
    %v1609 = vpop.permute.xlu0 %1608
    %1610 = vrot.lane.b32.xlu0 %v1492, 4
    %v1611 = vpop.permute.xlu0 %1610
    %1612 = vrot.lane.b32.xlu0 %v1493, 4
    %v1613 = vpop.permute.xlu0 %1612
    %1614 = vrot.lane.b32.xlu0 %v1494, 4
    %v1615 = vpop.permute.xlu0 %1614
    %1616 = vrot.lane.b32.xlu0 %v1495, 4
    %v1617 = vpop.permute.xlu0 %1616
    %1618 = vrot.lane.b32.xlu0 %v1496, 4
    %v1619 = vpop.permute.xlu0 %1618
    %1620 = vrot.lane.b32.xlu0 %v1497, 4
    %v1621 = vpop.permute.xlu0 %1620
    %1622 = vrot.lane.b32.xlu0 %v1498, 4
    %v1623 = vpop.permute.xlu0 %1622
    %1624 = vrot.lane.b32.xlu0 %v1499, 4
    %v1625 = vpop.permute.xlu0 %1624
    %1626 = vrot.lane.b32.xlu0 %v1500, 4
    %v1627 = vpop.permute.xlu0 %1626
    %1628 = vrot.lane.b32.xlu0 %v1501, 4
    %v1629 = vpop.permute.xlu0 %1628
    %v1646 = vsel %vm1126, %v1535, %v1599
    %v1647 = vsel %vm1126, %v1537, %v1601
    %v1648 = vsel %vm1126, %v1539, %v1603
    %v1649 = vsel %vm1126, %v1541, %v1605
    %v1650 = vsel %vm1126, %v1543, %v1607
    %v1651 = vsel %vm1126, %v1545, %v1609
    %v1652 = vsel %vm1126, %v1547, %v1611
    %v1653 = vsel %vm1126, %v1549, %v1613
    %v1654 = vsel %vm1126, %v1551, %v1615
    %v1655 = vsel %vm1126, %v1553, %v1617
    %v1656 = vsel %vm1126, %v1555, %v1619
    %v1657 = vsel %vm1126, %v1557, %v1621
    %v1658 = vsel %vm1126, %v1559, %v1623
    %v1659 = vsel %vm1126, %v1561, %v1625
    %v1660 = vsel %vm1126, %v1563, %v1627
    %v1661 = vsel %vm1126, %v1565, %v1629
    %v1662 = vmul.f32 %v1486, %v1146
    %v1663 = vmul.f32 %v1487, %v1150
    %v1664 = vmul.f32 %v1488, %v1154
    %v1665 = vmul.f32 %v1489, %v1158
    %v1666 = vmul.f32 %v1490, %v1162
    %v1667 = vmul.f32 %v1491, %v1166
    %v1668 = vmul.f32 %v1492, %v1170
    %v1669 = vmul.f32 %v1493, %v1174
    %v1670 = vmul.f32 %v1494, %v1178
    %v1671 = vmul.f32 %v1495, %v1182
    %v1672 = vmul.f32 %v1496, %v1186
    %v1673 = vmul.f32 %v1497, %v1190
    %v1674 = vmul.f32 %v1498, %v1194
    %v1675 = vmul.f32 %v1499, %v1198
    %v1676 = vmul.f32 %v1500, %v1202
    %v1677 = vmul.f32 %v1501, %v1206
    %v1678 = vmul.f32 %v1646, %v1242
    %v1679 = vmul.f32 %v1647, %v1246
    %v1680 = vmul.f32 %v1648, %v1250
    %v1681 = vmul.f32 %v1649, %v1254
    %v1682 = vmul.f32 %v1650, %v1258
    %v1683 = vmul.f32 %v1651, %v1262
    %v1684 = vmul.f32 %v1652, %v1266
    %v1685 = vmul.f32 %v1653, %v1270
    %v1686 = vmul.f32 %v1654, %v1274
    %v1687 = vmul.f32 %v1655, %v1278
    %v1688 = vmul.f32 %v1656, %v1282
    %v1689 = vmul.f32 %v1657, %v1286
    %v1690 = vmul.f32 %v1658, %v1290
    %v1691 = vmul.f32 %v1659, %v1294
    %v1692 = vmul.f32 %v1660, %v1298
    %v1693 = vmul.f32 %v1661, %v1302
    %v1694 = vadd.f32 %v1662, %v1678
    %v1695 = vadd.f32 %v1663, %v1679
    %v1696 = vadd.f32 %v1664, %v1680
    %v1697 = vadd.f32 %v1665, %v1681
    %v1698 = vadd.f32 %v1666, %v1682
    %v1699 = vadd.f32 %v1667, %v1683
    %v1700 = vadd.f32 %v1668, %v1684
    %v1701 = vadd.f32 %v1669, %v1685
    %v1702 = vadd.f32 %v1670, %v1686
    %v1703 = vadd.f32 %v1671, %v1687
    %v1704 = vadd.f32 %v1672, %v1688
    %v1705 = vadd.f32 %v1673, %v1689
    %v1706 = vadd.f32 %v1674, %v1690
    %v1707 = vadd.f32 %v1675, %v1691
    %v1708 = vadd.f32 %v1676, %v1692
    %v1709 = vadd.f32 %v1677, %v1693
    %v1710 = vcombine.low %v1335, %v1337
    %v1712 = vunpack.c.l.s4 1983009808
    %v1713 = vunpack.c.0.s8 %v1712
    %v1714 = vlaneseq
    %v1715 = vshrl.u32 %v1714, 7
    %v1716 = vsub.s32 %v1713, %v1715
    %v1717 = vrot.slane %v1710, %v1716
    %v1718 = vcombine.low %v1336, %v1338
    %v1720 = vunpack.c.l.s4 1983009808
    %v1721 = vunpack.c.0.s8 %v1720
    %v1722 = vlaneseq
    %v1723 = vshrl.u32 %v1722, 7
    %v1724 = vsub.s32 %v1721, %v1723
    %v1725 = vrot.slane %v1718, %v1724
    %v1726 = vcombine.low %v1339, %v1341
    %v1728 = vunpack.c.l.s4 1983009808
    %v1729 = vunpack.c.0.s8 %v1728
    %v1730 = vlaneseq
    %v1731 = vshrl.u32 %v1730, 7
    %v1732 = vsub.s32 %v1729, %v1731
    %v1733 = vrot.slane %v1726, %v1732
    %v1734 = vcombine.low %v1340, %v1342
    %v1736 = vunpack.c.l.s4 1983009808
    %v1737 = vunpack.c.0.s8 %v1736
    %v1738 = vlaneseq
    %v1739 = vshrl.u32 %v1738, 7
    %v1740 = vsub.s32 %v1737, %v1739
    %v1741 = vrot.slane %v1734, %v1740
    %v1742 = vcombine.low %v1717, %v1725
    %v1743 = vcombine.high %v1717, %v1725
    %v1745 = vunpack.c.l.s4 1934713408
    %v1746 = vunpack.c.0.s8 %v1745
    %v1747 = vlaneseq
    %v1748 = vshrl.u32 %v1747, 7
    %v1749 = vsub.s32 %v1746, %v1748
    %v1750 = vrot.slane %v1742, %v1749
    %v1752 = vunpack.c.l.s4 1934713408
    %v1753 = vunpack.c.0.s8 %v1752
    %v1754 = vlaneseq
    %v1755 = vshrl.u32 %v1754, 7
    %v1756 = vsub.s32 %v1753, %v1755
    %v1757 = vrot.slane %v1743, %v1756
    %v1758 = vcombine.low %v1733, %v1741
    %v1759 = vcombine.high %v1733, %v1741
    %v1761 = vunpack.c.l.s4 1934713408
    %v1762 = vunpack.c.0.s8 %v1761
    %v1763 = vlaneseq
    %v1764 = vshrl.u32 %v1763, 7
    %v1765 = vsub.s32 %v1762, %v1764
    %v1766 = vrot.slane %v1758, %v1765
    %v1768 = vunpack.c.l.s4 1934713408
    %v1769 = vunpack.c.0.s8 %v1768
    %v1770 = vlaneseq
    %v1771 = vshrl.u32 %v1770, 7
    %v1772 = vsub.s32 %v1769, %v1771
    %v1773 = vrot.slane %v1759, %v1772
    %v1774 = vcombine.low %v1750, %v1766
    %v1775 = vcombine.high %v1750, %v1766
    %v1776 = vcombine.low %v1757, %v1773
    %v1777 = vcombine.high %v1757, %v1773
    %v1778 = vcombine.low %v1343, %v1345
    %v1780 = vunpack.c.l.s4 1983009808
    %v1781 = vunpack.c.0.s8 %v1780
    %v1782 = vlaneseq
    %v1783 = vshrl.u32 %v1782, 7
    %v1784 = vsub.s32 %v1781, %v1783
    %v1785 = vrot.slane %v1778, %v1784
    %v1786 = vcombine.low %v1344, %v1346
    %v1788 = vunpack.c.l.s4 1983009808
    %v1789 = vunpack.c.0.s8 %v1788
    %v1790 = vlaneseq
    %v1791 = vshrl.u32 %v1790, 7
    %v1792 = vsub.s32 %v1789, %v1791
    %v1793 = vrot.slane %v1786, %v1792
    %v1794 = vcombine.low %v1347, %v1349
    %v1796 = vunpack.c.l.s4 1983009808
    %v1797 = vunpack.c.0.s8 %v1796
    %v1798 = vlaneseq
    %v1799 = vshrl.u32 %v1798, 7
    %v1800 = vsub.s32 %v1797, %v1799
    %v1801 = vrot.slane %v1794, %v1800
    %v1802 = vcombine.low %v1348, %v1350
    %v1804 = vunpack.c.l.s4 1983009808
    %v1805 = vunpack.c.0.s8 %v1804
    %v1806 = vlaneseq
    %v1807 = vshrl.u32 %v1806, 7
    %v1808 = vsub.s32 %v1805, %v1807
    %v1809 = vrot.slane %v1802, %v1808
    %v1810 = vcombine.low %v1785, %v1793
    %v1811 = vcombine.high %v1785, %v1793
    %v1813 = vunpack.c.l.s4 1934713408
    %v1814 = vunpack.c.0.s8 %v1813
    %v1815 = vlaneseq
    %v1816 = vshrl.u32 %v1815, 7
    %v1817 = vsub.s32 %v1814, %v1816
    %v1818 = vrot.slane %v1810, %v1817
    %v1820 = vunpack.c.l.s4 1934713408
    %v1821 = vunpack.c.0.s8 %v1820
    %v1822 = vlaneseq
    %v1823 = vshrl.u32 %v1822, 7
    %v1824 = vsub.s32 %v1821, %v1823
    %v1825 = vrot.slane %v1811, %v1824
    %v1826 = vcombine.low %v1801, %v1809
    %v1827 = vcombine.high %v1801, %v1809
    %v1829 = vunpack.c.l.s4 1934713408
    %v1830 = vunpack.c.0.s8 %v1829
    %v1831 = vlaneseq
    %v1832 = vshrl.u32 %v1831, 7
    %v1833 = vsub.s32 %v1830, %v1832
    %v1834 = vrot.slane %v1826, %v1833
    %v1836 = vunpack.c.l.s4 1934713408
    %v1837 = vunpack.c.0.s8 %v1836
    %v1838 = vlaneseq
    %v1839 = vshrl.u32 %v1838, 7
    %v1840 = vsub.s32 %v1837, %v1839
    %v1841 = vrot.slane %v1827, %v1840
    %v1842 = vcombine.low %v1818, %v1834
    %v1843 = vcombine.high %v1818, %v1834
    %v1844 = vcombine.low %v1825, %v1841
    %v1845 = vcombine.high %v1825, %v1841
    %v1846 = vcombine.low %v1694, %v1696
    %v1848 = vunpack.c.l.s4 1983009808
    %v1849 = vunpack.c.0.s8 %v1848
    %v1850 = vlaneseq
    %v1851 = vshrl.u32 %v1850, 7
    %v1852 = vsub.s32 %v1849, %v1851
    %v1853 = vrot.slane %v1846, %v1852
    %v1854 = vcombine.low %v1695, %v1697
    %v1856 = vunpack.c.l.s4 1983009808
    %v1857 = vunpack.c.0.s8 %v1856
    %v1858 = vlaneseq
    %v1859 = vshrl.u32 %v1858, 7
    %v1860 = vsub.s32 %v1857, %v1859
    %v1861 = vrot.slane %v1854, %v1860
    %v1862 = vcombine.low %v1698, %v1700
    %v1864 = vunpack.c.l.s4 1983009808
    %v1865 = vunpack.c.0.s8 %v1864
    %v1866 = vlaneseq
    %v1867 = vshrl.u32 %v1866, 7
    %v1868 = vsub.s32 %v1865, %v1867
    %v1869 = vrot.slane %v1862, %v1868
    %v1870 = vcombine.low %v1699, %v1701
    %v1872 = vunpack.c.l.s4 1983009808
    %v1873 = vunpack.c.0.s8 %v1872
    %v1874 = vlaneseq
    %v1875 = vshrl.u32 %v1874, 7
    %v1876 = vsub.s32 %v1873, %v1875
    %v1877 = vrot.slane %v1870, %v1876
    %v1878 = vcombine.low %v1853, %v1861
    %v1879 = vcombine.high %v1853, %v1861
    %v1881 = vunpack.c.l.s4 1934713408
    %v1882 = vunpack.c.0.s8 %v1881
    %v1883 = vlaneseq
    %v1884 = vshrl.u32 %v1883, 7
    %v1885 = vsub.s32 %v1882, %v1884
    %v1886 = vrot.slane %v1878, %v1885
    %v1888 = vunpack.c.l.s4 1934713408
    %v1889 = vunpack.c.0.s8 %v1888
    %v1890 = vlaneseq
    %v1891 = vshrl.u32 %v1890, 7
    %v1892 = vsub.s32 %v1889, %v1891
    %v1893 = vrot.slane %v1879, %v1892
    %v1894 = vcombine.low %v1869, %v1877
    %v1895 = vcombine.high %v1869, %v1877
    %v1897 = vunpack.c.l.s4 1934713408
    %v1898 = vunpack.c.0.s8 %v1897
    %v1899 = vlaneseq
    %v1900 = vshrl.u32 %v1899, 7
    %v1901 = vsub.s32 %v1898, %v1900
    %v1902 = vrot.slane %v1894, %v1901
    %v1904 = vunpack.c.l.s4 1934713408
    %v1905 = vunpack.c.0.s8 %v1904
    %v1906 = vlaneseq
    %v1907 = vshrl.u32 %v1906, 7
    %v1908 = vsub.s32 %v1905, %v1907
    %v1909 = vrot.slane %v1895, %v1908
    %v1910 = vcombine.low %v1886, %v1902
    %v1911 = vcombine.high %v1886, %v1902
    %v1912 = vcombine.low %v1893, %v1909
    %v1913 = vcombine.high %v1893, %v1909
    %v1914 = vcombine.low %v1702, %v1704
    %v1916 = vunpack.c.l.s4 1983009808
    %v1917 = vunpack.c.0.s8 %v1916
    %v1918 = vlaneseq
    %v1919 = vshrl.u32 %v1918, 7
    %v1920 = vsub.s32 %v1917, %v1919
    %v1921 = vrot.slane %v1914, %v1920
    %v1922 = vcombine.low %v1703, %v1705
    %v1924 = vunpack.c.l.s4 1983009808
    %v1925 = vunpack.c.0.s8 %v1924
    %v1926 = vlaneseq
    %v1927 = vshrl.u32 %v1926, 7
    %v1928 = vsub.s32 %v1925, %v1927
    %v1929 = vrot.slane %v1922, %v1928
    %v1930 = vcombine.low %v1706, %v1708
    %v1932 = vunpack.c.l.s4 1983009808
    %v1933 = vunpack.c.0.s8 %v1932
    %v1934 = vlaneseq
    %v1935 = vshrl.u32 %v1934, 7
    %v1936 = vsub.s32 %v1933, %v1935
    %v1937 = vrot.slane %v1930, %v1936
    %v1938 = vcombine.low %v1707, %v1709
    %v1940 = vunpack.c.l.s4 1983009808
    %v1941 = vunpack.c.0.s8 %v1940
    %v1942 = vlaneseq
    %v1943 = vshrl.u32 %v1942, 7
    %v1944 = vsub.s32 %v1941, %v1943
    %v1945 = vrot.slane %v1938, %v1944
    %v1946 = vcombine.low %v1921, %v1929
    %v1947 = vcombine.high %v1921, %v1929
    %v1949 = vunpack.c.l.s4 1934713408
    %v1950 = vunpack.c.0.s8 %v1949
    %v1951 = vlaneseq
    %v1952 = vshrl.u32 %v1951, 7
    %v1953 = vsub.s32 %v1950, %v1952
    %v1954 = vrot.slane %v1946, %v1953
    %v1956 = vunpack.c.l.s4 1934713408
    %v1957 = vunpack.c.0.s8 %v1956
    %v1958 = vlaneseq
    %v1959 = vshrl.u32 %v1958, 7
    %v1960 = vsub.s32 %v1957, %v1959
    %v1961 = vrot.slane %v1947, %v1960
    %v1962 = vcombine.low %v1937, %v1945
    %v1963 = vcombine.high %v1937, %v1945
    %v1965 = vunpack.c.l.s4 1934713408
    %v1966 = vunpack.c.0.s8 %v1965
    %v1967 = vlaneseq
    %v1968 = vshrl.u32 %v1967, 7
    %v1969 = vsub.s32 %v1966, %v1968
    %v1970 = vrot.slane %v1962, %v1969
    %v1972 = vunpack.c.l.s4 1934713408
    %v1973 = vunpack.c.0.s8 %v1972
    %v1974 = vlaneseq
    %v1975 = vshrl.u32 %v1974, 7
    %v1976 = vsub.s32 %v1973, %v1975
    %v1977 = vrot.slane %v1963, %v1976
    %v1978 = vcombine.low %v1954, %v1970
    %v1979 = vcombine.high %v1954, %v1970
    %v1980 = vcombine.low %v1961, %v1977
    %v1981 = vcombine.high %v1961, %v1977
    %v1982 = vcombine.low %v529, %v536
    %v1984 = vunpack.c.l.s4 1983009808
    %v1985 = vunpack.c.0.s8 %v1984
    %v1986 = vlaneseq
    %v1987 = vshrl.u32 %v1986, 7
    %v1988 = vsub.s32 %v1985, %v1987
    %v1989 = vrot.slane %v1982, %v1988
    %v1990 = vcombine.low %v553, %v554
    %v1992 = vunpack.c.l.s4 1983009808
    %v1993 = vunpack.c.0.s8 %v1992
    %v1994 = vlaneseq
    %v1995 = vshrl.u32 %v1994, 7
    %v1996 = vsub.s32 %v1993, %v1995
    %v1997 = vrot.slane %v1990, %v1996
    %v1998 = vcombine.low %v545, %v552
    %v2000 = vunpack.c.l.s4 1983009808
    %v2001 = vunpack.c.0.s8 %v2000
    %v2002 = vlaneseq
    %v2003 = vshrl.u32 %v2002, 7
    %v2004 = vsub.s32 %v2001, %v2003
    %v2005 = vrot.slane %v1998, %v2004
    %v2006 = vcombine.low %v555, %v556
    %v2008 = vunpack.c.l.s4 1983009808
    %v2009 = vunpack.c.0.s8 %v2008
    %v2010 = vlaneseq
    %v2011 = vshrl.u32 %v2010, 7
    %v2012 = vsub.s32 %v2009, %v2011
    %v2013 = vrot.slane %v2006, %v2012
    %v2014 = vcombine.low %v1989, %v1997
    %v2015 = vcombine.high %v1989, %v1997
    %v2017 = vunpack.c.l.s4 1934713408
    %v2018 = vunpack.c.0.s8 %v2017
    %v2019 = vlaneseq
    %v2020 = vshrl.u32 %v2019, 7
    %v2021 = vsub.s32 %v2018, %v2020
    %v2022 = vrot.slane %v2014, %v2021
    %v2024 = vunpack.c.l.s4 1934713408
    %v2025 = vunpack.c.0.s8 %v2024
    %v2026 = vlaneseq
    %v2027 = vshrl.u32 %v2026, 7
    %v2028 = vsub.s32 %v2025, %v2027
    %v2029 = vrot.slane %v2015, %v2028
    %v2030 = vcombine.low %v2005, %v2013
    %v2031 = vcombine.high %v2005, %v2013
    %v2033 = vunpack.c.l.s4 1934713408
    %v2034 = vunpack.c.0.s8 %v2033
    %v2035 = vlaneseq
    %v2036 = vshrl.u32 %v2035, 7
    %v2037 = vsub.s32 %v2034, %v2036
    %v2038 = vrot.slane %v2030, %v2037
    %v2040 = vunpack.c.l.s4 1934713408
    %v2041 = vunpack.c.0.s8 %v2040
    %v2042 = vlaneseq
    %v2043 = vshrl.u32 %v2042, 7
    %v2044 = vsub.s32 %v2041, %v2043
    %v2045 = vrot.slane %v2031, %v2044
    %v2046 = vcombine.low %v2022, %v2038
    %v2047 = vcombine.high %v2022, %v2038
    %v2048 = vcombine.low %v2029, %v2045
    %v2049 = vcombine.high %v2029, %v2045
    %v2050 = vcombine.low %v597, %v604
    %v2052 = vunpack.c.l.s4 1983009808
    %v2053 = vunpack.c.0.s8 %v2052
    %v2054 = vlaneseq
    %v2055 = vshrl.u32 %v2054, 7
    %v2056 = vsub.s32 %v2053, %v2055
    %v2057 = vrot.slane %v2050, %v2056
    %v2058 = vcombine.low %v621, %v622
    %v2060 = vunpack.c.l.s4 1983009808
    %v2061 = vunpack.c.0.s8 %v2060
    %v2062 = vlaneseq
    %v2063 = vshrl.u32 %v2062, 7
    %v2064 = vsub.s32 %v2061, %v2063
    %v2065 = vrot.slane %v2058, %v2064
    %v2066 = vcombine.low %v613, %v620
    %v2068 = vunpack.c.l.s4 1983009808
    %v2069 = vunpack.c.0.s8 %v2068
    %v2070 = vlaneseq
    %v2071 = vshrl.u32 %v2070, 7
    %v2072 = vsub.s32 %v2069, %v2071
    %v2073 = vrot.slane %v2066, %v2072
    %v2074 = vcombine.low %v623, %v624
    %v2076 = vunpack.c.l.s4 1983009808
    %v2077 = vunpack.c.0.s8 %v2076
    %v2078 = vlaneseq
    %v2079 = vshrl.u32 %v2078, 7
    %v2080 = vsub.s32 %v2077, %v2079
    %v2081 = vrot.slane %v2074, %v2080
    %v2082 = vcombine.low %v2057, %v2065
    %v2083 = vcombine.high %v2057, %v2065
    %v2085 = vunpack.c.l.s4 1934713408
    %v2086 = vunpack.c.0.s8 %v2085
    %v2087 = vlaneseq
    %v2088 = vshrl.u32 %v2087, 7
    %v2089 = vsub.s32 %v2086, %v2088
    %v2090 = vrot.slane %v2082, %v2089
    %v2092 = vunpack.c.l.s4 1934713408
    %v2093 = vunpack.c.0.s8 %v2092
    %v2094 = vlaneseq
    %v2095 = vshrl.u32 %v2094, 7
    %v2096 = vsub.s32 %v2093, %v2095
    %v2097 = vrot.slane %v2083, %v2096
    %v2098 = vcombine.low %v2073, %v2081
    %v2099 = vcombine.high %v2073, %v2081
    %v2101 = vunpack.c.l.s4 1934713408
    %v2102 = vunpack.c.0.s8 %v2101
    %v2103 = vlaneseq
    %v2104 = vshrl.u32 %v2103, 7
    %v2105 = vsub.s32 %v2102, %v2104
    %v2106 = vrot.slane %v2098, %v2105
    %v2108 = vunpack.c.l.s4 1934713408
    %v2109 = vunpack.c.0.s8 %v2108
    %v2110 = vlaneseq
    %v2111 = vshrl.u32 %v2110, 7
    %v2112 = vsub.s32 %v2109, %v2111
    %v2113 = vrot.slane %v2099, %v2112
    %v2114 = vcombine.low %v2090, %v2106
    %v2115 = vcombine.high %v2090, %v2106
    %v2116 = vcombine.low %v2097, %v2113
    %v2117 = vcombine.high %v2097, %v2113
    %v2118 = vld [vmem:[#allocation5] sm:$0xff]
    %v2119 = vld [vmem:[#allocation5 + $0x8] sm:$0xff]
    %vm2120 = vcmask 64512
    %v2122 = vsel %vm2120, %v1774, 0
    %v2125 = vsel %vm2120, %v1842, 0
    %v2128 = vsel %vm2120, %v1910, 0
    %v2131 = vsel %vm2120, %v1978, 0
    %2133 = vmatprep.subr.mxu0 0.0
    %2134 = vmatpush1.xpose.msra.mxu0 0.0
    %2135 = vmatprep.subr.mxu0 0.0
    %2136 = vmatpush1.xpose.msra.mxu0 0.0
    %2137 = vmatprep.subr.mxu0 0.0
    %2138 = vmatpush1.xpose.msra.mxu0 0.0
    %2139 = vmatprep.subr.mxu0 0.0
    %2140 = vmatpush1.xpose.msra.mxu0 0.0
    %2141 = vmatprep.subr.mxu0 0.0
    %2142 = vmatpush1.xpose.msra.mxu0 0.0
    %2143 = vmatprep.subr.mxu0 0.0
    %2144 = vmatpush1.xpose.msra.mxu0 0.0
    %2145 = vmatprep.subr.mxu0 0.0
    %2146 = vmatpush1.xpose.msra.mxu0 0.0
    %2147 = vmatprep.subr.mxu0 0.0
    %2148 = vmatpush1.xpose.msra.mxu0 0.0
    %2149 = vmatprep.subr.mxu0 0.0
    %2150 = vmatpush1.xpose.msra.mxu0 0.0
    %2151 = vmatprep.subr.mxu0 0.0
    %2152 = vmatpush1.xpose.msra.mxu0 0.0
    %2153 = vmatprep.subr.mxu0 0.0
    %2154 = vmatpush1.xpose.msra.mxu0 0.0
    %2155 = vmatprep.subr.mxu0 0.0
    %2156 = vmatpush1.xpose.msra.mxu0 0.0
    %2157 = vmatprep.subr.mxu0 0.0
    %2158 = vmatpush1.xpose.msra.mxu0 0.0
    %2159 = vmatprep.subr.mxu0 0.0
    %2160 = vmatpush1.xpose.msra.mxu0 0.0
    %2161 = vmatprep.subr.mxu0 0.0
    %2162 = vmatpush1.xpose.msra.mxu0 %v2131
    %2163 = vmatprep.subr.mxu0 0.0
    %2164 = vmatpush1.xpose.msra.mxu0 %v2128
    %2165 = vmatprep.subr.mxu0 0.0
    %2166 = vmatpush2.xpose.msra.mxu0 0.0
    %2167 = vmatprep.subr.mxu0 0.0
    %2168 = vmatpush2.xpose.msra.mxu0 0.0
    %2169 = vmatprep.subr.mxu0 0.0
    %2170 = vmatpush2.xpose.msra.mxu0 0.0
    %2171 = vmatprep.subr.mxu0 0.0
    %2172 = vmatpush2.xpose.msra.mxu0 0.0
    %2173 = vmatprep.subr.mxu0 0.0
    %2174 = vmatpush2.xpose.msra.mxu0 0.0
    %2175 = vmatprep.subr.mxu0 0.0
    %2176 = vmatpush2.xpose.msra.mxu0 0.0
    %2177 = vmatprep.subr.mxu0 0.0
    %2178 = vmatpush2.xpose.msra.mxu0 0.0
    %2179 = vmatprep.subr.mxu0 0.0
    %2180 = vmatpush2.xpose.msra.mxu0 0.0
    %2181 = vmatprep.subr.mxu0 0.0
    %2182 = vmatpush2.xpose.msra.mxu0 0.0
    %2183 = vmatprep.subr.mxu0 0.0
    %2184 = vmatpush2.xpose.msra.mxu0 0.0
    %2185 = vmatprep.subr.mxu0 0.0
    %2186 = vmatpush2.xpose.msra.mxu0 0.0
    %2187 = vmatprep.subr.mxu0 0.0
    %2188 = vmatpush2.xpose.msra.mxu0 0.0
    %2189 = vmatprep.subr.mxu0 0.0
    %2190 = vmatpush2.xpose.msra.mxu0 0.0
    %2191 = vmatprep.subr.mxu0 0.0
    %2192 = vmatpush2.xpose.msra.mxu0 0.0
    %2193 = vmatprep.subr.mxu0 0.0
    %2194 = vmatpush2.xpose.msra.mxu0 0.0
    %2195 = vmatprep.subr.mxu0 0.0
    %2196 = vmatpush2.xpose.msra.mxu0 0.0
    %2197 = vmatprep.mubr.f32.mxu0 0.0
    %2198 = vmatmul.mubr.f32.gmra.mxu0 %v2122
    %v2199 = vpop.f32.mrf.mxu0
    %v2200 = vadd.f32 %v2118, %v2199
    %v2201 = vpop.f32.mrf.mxu0
    %2202 = vmatprep.mubr.f32.mxu0 0.0
    %2203 = vmatmul.mubr.f32.gmra.mxu0 %v2125
    %v2204 = vpop.f32.mrf.mxu0
    %v2205 = vadd.f32 %v2119, %v2204
    %v2206 = vpop.f32.mrf.mxu0
    %2207 = vdwg.mxu0
    %v2209 = vsel %vm2120, %v1775, 0
    %v2212 = vsel %vm2120, %v1843, 0
    %v2215 = vsel %vm2120, %v1911, 0
    %v2218 = vsel %vm2120, %v1979, 0
    %2220 = vmatprep.subr.mxu0 0.0
    %2221 = vmatpush1.xpose.msra.mxu0 0.0
    %2222 = vmatprep.subr.mxu0 0.0
    %2223 = vmatpush1.xpose.msra.mxu0 0.0
    %2224 = vmatprep.subr.mxu0 0.0
    %2225 = vmatpush1.xpose.msra.mxu0 0.0
    %2226 = vmatprep.subr.mxu0 0.0
    %2227 = vmatpush1.xpose.msra.mxu0 0.0
    %2228 = vmatprep.subr.mxu0 0.0
    %2229 = vmatpush1.xpose.msra.mxu0 0.0
    %2230 = vmatprep.subr.mxu0 0.0
    %2231 = vmatpush1.xpose.msra.mxu0 0.0
    %2232 = vmatprep.subr.mxu0 0.0
    %2233 = vmatpush1.xpose.msra.mxu0 0.0
    %2234 = vmatprep.subr.mxu0 0.0
    %2235 = vmatpush1.xpose.msra.mxu0 0.0
    %2236 = vmatprep.subr.mxu0 0.0
    %2237 = vmatpush1.xpose.msra.mxu0 0.0
    %2238 = vmatprep.subr.mxu0 0.0
    %2239 = vmatpush1.xpose.msra.mxu0 0.0
    %2240 = vmatprep.subr.mxu0 0.0
    %2241 = vmatpush1.xpose.msra.mxu0 0.0
    %2242 = vmatprep.subr.mxu0 0.0
    %2243 = vmatpush1.xpose.msra.mxu0 0.0
    %2244 = vmatprep.subr.mxu0 0.0
    %2245 = vmatpush1.xpose.msra.mxu0 0.0
    %2246 = vmatprep.subr.mxu0 0.0
    %2247 = vmatpush1.xpose.msra.mxu0 0.0
    %2248 = vmatprep.subr.mxu0 0.0
    %2249 = vmatpush1.xpose.msra.mxu0 %v2218
    %2250 = vmatprep.subr.mxu0 0.0
    %2251 = vmatpush1.xpose.msra.mxu0 %v2215
    %2252 = vmatprep.subr.mxu0 0.0
    %2253 = vmatpush2.xpose.msra.mxu0 0.0
    %2254 = vmatprep.subr.mxu0 0.0
    %2255 = vmatpush2.xpose.msra.mxu0 0.0
    %2256 = vmatprep.subr.mxu0 0.0
    %2257 = vmatpush2.xpose.msra.mxu0 0.0
    %2258 = vmatprep.subr.mxu0 0.0
    %2259 = vmatpush2.xpose.msra.mxu0 0.0
    %2260 = vmatprep.subr.mxu0 0.0
    %2261 = vmatpush2.xpose.msra.mxu0 0.0
    %2262 = vmatprep.subr.mxu0 0.0
    %2263 = vmatpush2.xpose.msra.mxu0 0.0
    %2264 = vmatprep.subr.mxu0 0.0
    %2265 = vmatpush2.xpose.msra.mxu0 0.0
    %2266 = vmatprep.subr.mxu0 0.0
    %2267 = vmatpush2.xpose.msra.mxu0 0.0
    %2268 = vmatprep.subr.mxu0 0.0
    %2269 = vmatpush2.xpose.msra.mxu0 0.0
    %2270 = vmatprep.subr.mxu0 0.0
    %2271 = vmatpush2.xpose.msra.mxu0 0.0
    %2272 = vmatprep.subr.mxu0 0.0
    %2273 = vmatpush2.xpose.msra.mxu0 0.0
    %2274 = vmatprep.subr.mxu0 0.0
    %2275 = vmatpush2.xpose.msra.mxu0 0.0
    %2276 = vmatprep.subr.mxu0 0.0
    %2277 = vmatpush2.xpose.msra.mxu0 0.0
    %2278 = vmatprep.subr.mxu0 0.0
    %2279 = vmatpush2.xpose.msra.mxu0 0.0
    %2280 = vmatprep.subr.mxu0 0.0
    %2281 = vmatpush2.xpose.msra.mxu0 0.0
    %2282 = vmatprep.subr.mxu0 0.0
    %2283 = vmatpush2.xpose.msra.mxu0 0.0
    %2284 = vmatprep.mubr.f32.mxu0 0.0
    %2285 = vmatmul.mubr.f32.gmra.mxu0 %v2209
    %v2286 = vpop.f32.mrf.mxu0
    %v2287 = vadd.f32 %v2118, %v2286
    %v2288 = vpop.f32.mrf.mxu0
    %2289 = vmatprep.mubr.f32.mxu0 0.0
    %2290 = vmatmul.mubr.f32.gmra.mxu0 %v2212
    %v2291 = vpop.f32.mrf.mxu0
    %v2292 = vadd.f32 %v2119, %v2291
    %v2293 = vpop.f32.mrf.mxu0
    %2294 = vdwg.mxu0
    %v2296 = vsel %vm2120, %v1776, 0
    %v2299 = vsel %vm2120, %v1844, 0
    %v2302 = vsel %vm2120, %v1912, 0
    %v2305 = vsel %vm2120, %v1980, 0
    %2307 = vmatprep.subr.mxu0 0.0
    %2308 = vmatpush1.xpose.msra.mxu0 0.0
    %2309 = vmatprep.subr.mxu0 0.0
    %2310 = vmatpush1.xpose.msra.mxu0 0.0
    %2311 = vmatprep.subr.mxu0 0.0
    %2312 = vmatpush1.xpose.msra.mxu0 0.0
    %2313 = vmatprep.subr.mxu0 0.0
    %2314 = vmatpush1.xpose.msra.mxu0 0.0
    %2315 = vmatprep.subr.mxu0 0.0
    %2316 = vmatpush1.xpose.msra.mxu0 0.0
    %2317 = vmatprep.subr.mxu0 0.0
    %2318 = vmatpush1.xpose.msra.mxu0 0.0
    %2319 = vmatprep.subr.mxu0 0.0
    %2320 = vmatpush1.xpose.msra.mxu0 0.0
    %2321 = vmatprep.subr.mxu0 0.0
    %2322 = vmatpush1.xpose.msra.mxu0 0.0
    %2323 = vmatprep.subr.mxu0 0.0
    %2324 = vmatpush1.xpose.msra.mxu0 0.0
    %2325 = vmatprep.subr.mxu0 0.0
    %2326 = vmatpush1.xpose.msra.mxu0 0.0
    %2327 = vmatprep.subr.mxu0 0.0
    %2328 = vmatpush1.xpose.msra.mxu0 0.0
    %2329 = vmatprep.subr.mxu0 0.0
    %2330 = vmatpush1.xpose.msra.mxu0 0.0
    %2331 = vmatprep.subr.mxu0 0.0
    %2332 = vmatpush1.xpose.msra.mxu0 0.0
    %2333 = vmatprep.subr.mxu0 0.0
    %2334 = vmatpush1.xpose.msra.mxu0 0.0
    %2335 = vmatprep.subr.mxu0 0.0
    %2336 = vmatpush1.xpose.msra.mxu0 %v2305
    %2337 = vmatprep.subr.mxu0 0.0
    %2338 = vmatpush1.xpose.msra.mxu0 %v2302
    %2339 = vmatprep.subr.mxu0 0.0
    %2340 = vmatpush2.xpose.msra.mxu0 0.0
    %2341 = vmatprep.subr.mxu0 0.0
    %2342 = vmatpush2.xpose.msra.mxu0 0.0
    %2343 = vmatprep.subr.mxu0 0.0
    %2344 = vmatpush2.xpose.msra.mxu0 0.0
    %2345 = vmatprep.subr.mxu0 0.0
    %2346 = vmatpush2.xpose.msra.mxu0 0.0
    %2347 = vmatprep.subr.mxu0 0.0
    %2348 = vmatpush2.xpose.msra.mxu0 0.0
    %2349 = vmatprep.subr.mxu0 0.0
    %2350 = vmatpush2.xpose.msra.mxu0 0.0
    %2351 = vmatprep.subr.mxu0 0.0
    %2352 = vmatpush2.xpose.msra.mxu0 0.0
    %2353 = vmatprep.subr.mxu0 0.0
    %2354 = vmatpush2.xpose.msra.mxu0 0.0
    %2355 = vmatprep.subr.mxu0 0.0
    %2356 = vmatpush2.xpose.msra.mxu0 0.0
    %2357 = vmatprep.subr.mxu0 0.0
    %2358 = vmatpush2.xpose.msra.mxu0 0.0
    %2359 = vmatprep.subr.mxu0 0.0
    %2360 = vmatpush2.xpose.msra.mxu0 0.0
    %2361 = vmatprep.subr.mxu0 0.0
    %2362 = vmatpush2.xpose.msra.mxu0 0.0
    %2363 = vmatprep.subr.mxu0 0.0
    %2364 = vmatpush2.xpose.msra.mxu0 0.0
    %2365 = vmatprep.subr.mxu0 0.0
    %2366 = vmatpush2.xpose.msra.mxu0 0.0
    %2367 = vmatprep.subr.mxu0 0.0
    %2368 = vmatpush2.xpose.msra.mxu0 0.0
    %2369 = vmatprep.subr.mxu0 0.0
    %2370 = vmatpush2.xpose.msra.mxu0 0.0
    %2371 = vmatprep.mubr.f32.mxu0 0.0
    %2372 = vmatmul.mubr.f32.gmra.mxu0 %v2296
    %v2373 = vpop.f32.mrf.mxu0
    %v2374 = vadd.f32 %v2118, %v2373
    %v2375 = vpop.f32.mrf.mxu0
    %2376 = vmatprep.mubr.f32.mxu0 0.0
    %2377 = vmatmul.mubr.f32.gmra.mxu0 %v2299
    %v2378 = vpop.f32.mrf.mxu0
    %v2379 = vadd.f32 %v2119, %v2378
    %v2380 = vpop.f32.mrf.mxu0
    %2381 = vdwg.mxu0
    %v2383 = vsel %vm2120, %v1777, 0
    %v2386 = vsel %vm2120, %v1845, 0
    %v2389 = vsel %vm2120, %v1913, 0
    %v2392 = vsel %vm2120, %v1981, 0
    %2394 = vmatprep.subr.mxu0 0.0
    %2395 = vmatpush1.xpose.msra.mxu0 0.0
    %2396 = vmatprep.subr.mxu0 0.0
    %2397 = vmatpush1.xpose.msra.mxu0 0.0
    %2398 = vmatprep.subr.mxu0 0.0
    %2399 = vmatpush1.xpose.msra.mxu0 0.0
    %2400 = vmatprep.subr.mxu0 0.0
    %2401 = vmatpush1.xpose.msra.mxu0 0.0
    %2402 = vmatprep.subr.mxu0 0.0
    %2403 = vmatpush1.xpose.msra.mxu0 0.0
    %2404 = vmatprep.subr.mxu0 0.0
    %2405 = vmatpush1.xpose.msra.mxu0 0.0
    %2406 = vmatprep.subr.mxu0 0.0
    %2407 = vmatpush1.xpose.msra.mxu0 0.0
    %2408 = vmatprep.subr.mxu0 0.0
    %2409 = vmatpush1.xpose.msra.mxu0 0.0
    %2410 = vmatprep.subr.mxu0 0.0
    %2411 = vmatpush1.xpose.msra.mxu0 0.0
    %2412 = vmatprep.subr.mxu0 0.0
    %2413 = vmatpush1.xpose.msra.mxu0 0.0
    %2414 = vmatprep.subr.mxu0 0.0
    %2415 = vmatpush1.xpose.msra.mxu0 0.0
    %2416 = vmatprep.subr.mxu0 0.0
    %2417 = vmatpush1.xpose.msra.mxu0 0.0
    %2418 = vmatprep.subr.mxu0 0.0
    %2419 = vmatpush1.xpose.msra.mxu0 0.0
    %2420 = vmatprep.subr.mxu0 0.0
    %2421 = vmatpush1.xpose.msra.mxu0 0.0
    %2422 = vmatprep.subr.mxu0 0.0
    %2423 = vmatpush1.xpose.msra.mxu0 %v2392
    %2424 = vmatprep.subr.mxu0 0.0
    %2425 = vmatpush1.xpose.msra.mxu0 %v2389
    %2426 = vmatprep.subr.mxu0 0.0
    %2427 = vmatpush2.xpose.msra.mxu0 0.0
    %2428 = vmatprep.subr.mxu0 0.0
    %2429 = vmatpush2.xpose.msra.mxu0 0.0
    %2430 = vmatprep.subr.mxu0 0.0
    %2431 = vmatpush2.xpose.msra.mxu0 0.0
    %2432 = vmatprep.subr.mxu0 0.0
    %2433 = vmatpush2.xpose.msra.mxu0 0.0
    %2434 = vmatprep.subr.mxu0 0.0
    %2435 = vmatpush2.xpose.msra.mxu0 0.0
    %2436 = vmatprep.subr.mxu0 0.0
    %2437 = vmatpush2.xpose.msra.mxu0 0.0
    %2438 = vmatprep.subr.mxu0 0.0
    %2439 = vmatpush2.xpose.msra.mxu0 0.0
    %2440 = vmatprep.subr.mxu0 0.0
    %2441 = vmatpush2.xpose.msra.mxu0 0.0
    %2442 = vmatprep.subr.mxu0 0.0
    %2443 = vmatpush2.xpose.msra.mxu0 0.0
    %2444 = vmatprep.subr.mxu0 0.0
    %2445 = vmatpush2.xpose.msra.mxu0 0.0
    %2446 = vmatprep.subr.mxu0 0.0
    %2447 = vmatpush2.xpose.msra.mxu0 0.0
    %2448 = vmatprep.subr.mxu0 0.0
    %2449 = vmatpush2.xpose.msra.mxu0 0.0
    %2450 = vmatprep.subr.mxu0 0.0
    %2451 = vmatpush2.xpose.msra.mxu0 0.0
    %2452 = vmatprep.subr.mxu0 0.0
    %2453 = vmatpush2.xpose.msra.mxu0 0.0
    %2454 = vmatprep.subr.mxu0 0.0
    %2455 = vmatpush2.xpose.msra.mxu0 0.0
    %2456 = vmatprep.subr.mxu0 0.0
    %2457 = vmatpush2.xpose.msra.mxu0 0.0
    %2458 = vmatprep.mubr.f32.mxu0 0.0
    %2459 = vmatmul.mubr.f32.gmra.mxu0 %v2383
    %v2460 = vpop.f32.mrf.mxu0
    %v2461 = vadd.f32 %v2118, %v2460
    %v2462 = vpop.f32.mrf.mxu0
    %2463 = vmatprep.mubr.f32.mxu0 0.0
    %2464 = vmatmul.mubr.f32.gmra.mxu0 %v2386
    %v2465 = vpop.f32.mrf.mxu0
    %v2466 = vadd.f32 %v2119, %v2465
    %v2467 = vpop.f32.mrf.mxu0
    %2468 = vdwg.mxu0
    %vm2469 = vcmask 130048
    %v2470 = vsel %vm2469, %v2200, -inf
    %2471 = vmax.xlane.f32.xlu0 %v2470
    %v2472 = vpop.xlane.xlu0 %2471
    %v2473 = vsel %vm2469, %v2205, -inf
    %2474 = vmax.xlane.f32.xlu0 %v2473
    %v2475 = vpop.xlane.xlu0 %2474
    %v2476 = vsel %vm2469, %v2287, -inf
    %2477 = vmax.xlane.f32.xlu0 %v2476
    %v2478 = vpop.xlane.xlu0 %2477
    %v2479 = vsel %vm2469, %v2292, -inf
    %2480 = vmax.xlane.f32.xlu0 %v2479
    %v2481 = vpop.xlane.xlu0 %2480
    %v2482 = vsel %vm2469, %v2374, -inf
    %2483 = vmax.xlane.f32.xlu0 %v2482
    %v2484 = vpop.xlane.xlu0 %2483
    %v2485 = vsel %vm2469, %v2379, -inf
    %2486 = vmax.xlane.f32.xlu0 %v2485
    %v2487 = vpop.xlane.xlu0 %2486
    %v2488 = vsel %vm2469, %v2461, -inf
    %2489 = vmax.xlane.f32.xlu0 %v2488
    %v2490 = vpop.xlane.xlu0 %2489
    %v2491 = vsel %vm2469, %v2466, -inf
    %2492 = vmax.xlane.f32.xlu0 %v2491
    %v2493 = vpop.xlane.xlu0 %2492
    %v2494 = vsub.f32 %v2200, %v2472
    %v2495 = vsub.f32 %v2205, %v2475
    %v2496 = vsub.f32 %v2287, %v2478
    %v2497 = vsub.f32 %v2292, %v2481
    %v2498 = vsub.f32 %v2374, %v2484
    %v2499 = vsub.f32 %v2379, %v2487
    %v2500 = vsub.f32 %v2461, %v2490
    %v2501 = vsub.f32 %v2466, %v2493
    %v2502 = vmul.f32 %v2494, 1.442695
    %v2503 = vpow.pop %v2502
    %v2504 = vmul.f32 %v2495, 1.442695
    %v2505 = vpow.pop %v2504
    %v2506 = vmul.f32 %v2496, 1.442695
    %v2507 = vpow.pop %v2506
    %v2508 = vmul.f32 %v2497, 1.442695
    %v2509 = vpow.pop %v2508
    %v2510 = vmul.f32 %v2498, 1.442695
    %v2511 = vpow.pop %v2510
    %v2512 = vmul.f32 %v2499, 1.442695
    %v2513 = vpow.pop %v2512
    %v2514 = vmul.f32 %v2500, 1.442695
    %v2515 = vpow.pop %v2514
    %v2516 = vmul.f32 %v2501, 1.442695
    %v2517 = vpow.pop %v2516
    %v2518 = vsel %vm2469, %v2503, 0.0
    %2519 = vadd.xlane.f32.xlu0 %v2518
    %v2520 = vpop.xlane.xlu0 %2519
    %v2521 = vsel %vm2469, %v2505, 0.0
    %2522 = vadd.xlane.f32.xlu0 %v2521
    %v2523 = vpop.xlane.xlu0 %2522
    %v2524 = vsel %vm2469, %v2507, 0.0
    %2525 = vadd.xlane.f32.xlu0 %v2524
    %v2526 = vpop.xlane.xlu0 %2525
    %v2527 = vsel %vm2469, %v2509, 0.0
    %2528 = vadd.xlane.f32.xlu0 %v2527
    %v2529 = vpop.xlane.xlu0 %2528
    %v2530 = vsel %vm2469, %v2511, 0.0
    %2531 = vadd.xlane.f32.xlu0 %v2530
    %v2532 = vpop.xlane.xlu0 %2531
    %v2533 = vsel %vm2469, %v2513, 0.0
    %2534 = vadd.xlane.f32.xlu0 %v2533
    %v2535 = vpop.xlane.xlu0 %2534
    %v2536 = vsel %vm2469, %v2515, 0.0
    %2537 = vadd.xlane.f32.xlu0 %v2536
    %v2538 = vpop.xlane.xlu0 %2537
    %v2539 = vsel %vm2469, %v2517, 0.0
    %2540 = vadd.xlane.f32.xlu0 %v2539
    %v2541 = vpop.xlane.xlu0 %2540
    %v2542 = vrcp.pop %v2520
    %v2543 = vrcp.pop %v2523
    %v2544 = vrcp.pop %v2526
    %v2545 = vrcp.pop %v2529
    %v2546 = vrcp.pop %v2532
    %v2547 = vrcp.pop %v2535
    %v2548 = vrcp.pop %v2538
    %v2549 = vrcp.pop %v2541
    %v2550 = vmul.f32 %v2503, %v2542
    %v2551 = vmul.f32 %v2505, %v2543
    %v2552 = vmul.f32 %v2507, %v2544
    %v2553 = vmul.f32 %v2509, %v2545
    %v2554 = vmul.f32 %v2511, %v2546
    %v2555 = vmul.f32 %v2513, %v2547
    %v2556 = vmul.f32 %v2515, %v2548
    %v2557 = vmul.f32 %v2517, %v2549
    %v2559 = vsel %vm2469, %v2550, 0
    %v2562 = vsel %vm2469, %v2551, 0
    %2564 = vmatprep.subr.mxu0 0.0
    %2565 = vmatpush1.msra.mxu0 0.0
    %2566 = vmatprep.subr.mxu0 0.0
    %2567 = vmatpush1.msra.mxu0 0.0
    %2568 = vmatprep.subr.mxu0 0.0
    %2569 = vmatpush1.msra.mxu0 0.0
    %2570 = vmatprep.subr.mxu0 0.0
    %2571 = vmatpush1.msra.mxu0 0.0
    %2572 = vmatprep.subr.mxu0 0.0
    %2573 = vmatpush1.msra.mxu0 0.0
    %2574 = vmatprep.subr.mxu0 0.0
    %2575 = vmatpush1.msra.mxu0 0.0
    %2576 = vmatprep.subr.mxu0 0.0
    %2577 = vmatpush1.msra.mxu0 0.0
    %2578 = vmatprep.subr.mxu0 0.0
    %2579 = vmatpush1.msra.mxu0 0.0
    %2580 = vmatprep.subr.mxu0 0.0
    %2581 = vmatpush1.msra.mxu0 0.0
    %2582 = vmatprep.subr.mxu0 0.0
    %2583 = vmatpush1.msra.mxu0 0.0
    %2584 = vmatprep.subr.mxu0 0.0
    %2585 = vmatpush1.msra.mxu0 0.0
    %2586 = vmatprep.subr.mxu0 0.0
    %2587 = vmatpush1.msra.mxu0 0.0
    %2588 = vmatprep.subr.mxu0 0.0
    %2589 = vmatpush1.msra.mxu0 0.0
    %2590 = vmatprep.subr.mxu0 0.0
    %2591 = vmatpush1.msra.mxu0 0.0
    %2592 = vmatprep.subr.mxu0 0.0
    %2593 = vmatpush1.msra.mxu0 %v2114
    %2594 = vmatprep.subr.mxu0 0.0
    %2595 = vmatpush1.msra.mxu0 %v2046
    %2596 = vmatprep.subr.mxu0 0.0
    %2597 = vmatpush2.msra.mxu0 0.0
    %2598 = vmatprep.subr.mxu0 0.0
    %2599 = vmatpush2.msra.mxu0 0.0
    %2600 = vmatprep.subr.mxu0 0.0
    %2601 = vmatpush2.msra.mxu0 0.0
    %2602 = vmatprep.subr.mxu0 0.0
    %2603 = vmatpush2.msra.mxu0 0.0
    %2604 = vmatprep.subr.mxu0 0.0
    %2605 = vmatpush2.msra.mxu0 0.0
    %2606 = vmatprep.subr.mxu0 0.0
    %2607 = vmatpush2.msra.mxu0 0.0
    %2608 = vmatprep.subr.mxu0 0.0
    %2609 = vmatpush2.msra.mxu0 0.0
    %2610 = vmatprep.subr.mxu0 0.0
    %2611 = vmatpush2.msra.mxu0 0.0
    %2612 = vmatprep.subr.mxu0 0.0
    %2613 = vmatpush2.msra.mxu0 0.0
    %2614 = vmatprep.subr.mxu0 0.0
    %2615 = vmatpush2.msra.mxu0 0.0
    %2616 = vmatprep.subr.mxu0 0.0
    %2617 = vmatpush2.msra.mxu0 0.0
    %2618 = vmatprep.subr.mxu0 0.0
    %2619 = vmatpush2.msra.mxu0 0.0
    %2620 = vmatprep.subr.mxu0 0.0
    %2621 = vmatpush2.msra.mxu0 0.0
    %2622 = vmatprep.subr.mxu0 0.0
    %2623 = vmatpush2.msra.mxu0 0.0
    %2624 = vmatprep.subr.mxu0 0.0
    %2625 = vmatpush2.msra.mxu0 0.0
    %2626 = vmatprep.subr.mxu0 0.0
    %2627 = vmatpush2.msra.mxu0 0.0
    %2628 = vmatprep.mubr.f32.mxu0 0.0
    %2629 = vmatmul.mubr.f32.gmra.mxu0 %v2559
    %v2630 = vpop.f32.mrf.mxu0
    %v2631 = vadd.f32 0.0, %v2630
    %v2632 = vpop.f32.mrf.mxu0
    %2633 = vmatprep.mubr.f32.mxu0 0.0
    %2634 = vmatmul.mubr.f32.gmra.mxu0 %v2562
    %v2635 = vpop.f32.mrf.mxu0
    %v2636 = vadd.f32 0.0, %v2635
    %v2637 = vpop.f32.mrf.mxu0
    %2638 = vdwg.mxu0
    %v2640 = vsel %vm2469, %v2552, 0
    %v2643 = vsel %vm2469, %v2553, 0
    %2645 = vmatprep.subr.mxu0 0.0
    %2646 = vmatpush1.msra.mxu0 0.0
    %2647 = vmatprep.subr.mxu0 0.0
    %2648 = vmatpush1.msra.mxu0 0.0
    %2649 = vmatprep.subr.mxu0 0.0
    %2650 = vmatpush1.msra.mxu0 0.0
    %2651 = vmatprep.subr.mxu0 0.0
    %2652 = vmatpush1.msra.mxu0 0.0
    %2653 = vmatprep.subr.mxu0 0.0
    %2654 = vmatpush1.msra.mxu0 0.0
    %2655 = vmatprep.subr.mxu0 0.0
    %2656 = vmatpush1.msra.mxu0 0.0
    %2657 = vmatprep.subr.mxu0 0.0
    %2658 = vmatpush1.msra.mxu0 0.0
    %2659 = vmatprep.subr.mxu0 0.0
    %2660 = vmatpush1.msra.mxu0 0.0
    %2661 = vmatprep.subr.mxu0 0.0
    %2662 = vmatpush1.msra.mxu0 0.0
    %2663 = vmatprep.subr.mxu0 0.0
    %2664 = vmatpush1.msra.mxu0 0.0
    %2665 = vmatprep.subr.mxu0 0.0
    %2666 = vmatpush1.msra.mxu0 0.0
    %2667 = vmatprep.subr.mxu0 0.0
    %2668 = vmatpush1.msra.mxu0 0.0
    %2669 = vmatprep.subr.mxu0 0.0
    %2670 = vmatpush1.msra.mxu0 0.0
    %2671 = vmatprep.subr.mxu0 0.0
    %2672 = vmatpush1.msra.mxu0 0.0
    %2673 = vmatprep.subr.mxu0 0.0
    %2674 = vmatpush1.msra.mxu0 %v2115
    %2675 = vmatprep.subr.mxu0 0.0
    %2676 = vmatpush1.msra.mxu0 %v2047
    %2677 = vmatprep.subr.mxu0 0.0
    %2678 = vmatpush2.msra.mxu0 0.0
    %2679 = vmatprep.subr.mxu0 0.0
    %2680 = vmatpush2.msra.mxu0 0.0
    %2681 = vmatprep.subr.mxu0 0.0
    %2682 = vmatpush2.msra.mxu0 0.0
    %2683 = vmatprep.subr.mxu0 0.0
    %2684 = vmatpush2.msra.mxu0 0.0
    %2685 = vmatprep.subr.mxu0 0.0
    %2686 = vmatpush2.msra.mxu0 0.0
    %2687 = vmatprep.subr.mxu0 0.0
    %2688 = vmatpush2.msra.mxu0 0.0
    %2689 = vmatprep.subr.mxu0 0.0
    %2690 = vmatpush2.msra.mxu0 0.0
    %2691 = vmatprep.subr.mxu0 0.0
    %2692 = vmatpush2.msra.mxu0 0.0
    %2693 = vmatprep.subr.mxu0 0.0
    %2694 = vmatpush2.msra.mxu0 0.0
    %2695 = vmatprep.subr.mxu0 0.0
    %2696 = vmatpush2.msra.mxu0 0.0
    %2697 = vmatprep.subr.mxu0 0.0
    %2698 = vmatpush2.msra.mxu0 0.0
    %2699 = vmatprep.subr.mxu0 0.0
    %2700 = vmatpush2.msra.mxu0 0.0
    %2701 = vmatprep.subr.mxu0 0.0
    %2702 = vmatpush2.msra.mxu0 0.0
    %2703 = vmatprep.subr.mxu0 0.0
    %2704 = vmatpush2.msra.mxu0 0.0
    %2705 = vmatprep.subr.mxu0 0.0
    %2706 = vmatpush2.msra.mxu0 0.0
    %2707 = vmatprep.subr.mxu0 0.0
    %2708 = vmatpush2.msra.mxu0 0.0
    %2709 = vmatprep.mubr.f32.mxu0 0.0
    %2710 = vmatmul.mubr.f32.gmra.mxu0 %v2640
    %v2711 = vpop.f32.mrf.mxu0
    %v2712 = vadd.f32 0.0, %v2711
    %v2713 = vpop.f32.mrf.mxu0
    %2714 = vmatprep.mubr.f32.mxu0 0.0
    %2715 = vmatmul.mubr.f32.gmra.mxu0 %v2643
    %v2716 = vpop.f32.mrf.mxu0
    %v2717 = vadd.f32 0.0, %v2716
    %v2718 = vpop.f32.mrf.mxu0
    %2719 = vdwg.mxu0
    %v2721 = vsel %vm2469, %v2554, 0
    %v2724 = vsel %vm2469, %v2555, 0
    %2726 = vmatprep.subr.mxu0 0.0
    %2727 = vmatpush1.msra.mxu0 0.0
    %2728 = vmatprep.subr.mxu0 0.0
    %2729 = vmatpush1.msra.mxu0 0.0
    %2730 = vmatprep.subr.mxu0 0.0
    %2731 = vmatpush1.msra.mxu0 0.0
    %2732 = vmatprep.subr.mxu0 0.0
    %2733 = vmatpush1.msra.mxu0 0.0
    %2734 = vmatprep.subr.mxu0 0.0
    %2735 = vmatpush1.msra.mxu0 0.0
    %2736 = vmatprep.subr.mxu0 0.0
    %2737 = vmatpush1.msra.mxu0 0.0
    %2738 = vmatprep.subr.mxu0 0.0
    %2739 = vmatpush1.msra.mxu0 0.0
    %2740 = vmatprep.subr.mxu0 0.0
    %2741 = vmatpush1.msra.mxu0 0.0
    %2742 = vmatprep.subr.mxu0 0.0
    %2743 = vmatpush1.msra.mxu0 0.0
    %2744 = vmatprep.subr.mxu0 0.0
    %2745 = vmatpush1.msra.mxu0 0.0
    %2746 = vmatprep.subr.mxu0 0.0
    %2747 = vmatpush1.msra.mxu0 0.0
    %2748 = vmatprep.subr.mxu0 0.0
    %2749 = vmatpush1.msra.mxu0 0.0
    %2750 = vmatprep.subr.mxu0 0.0
    %2751 = vmatpush1.msra.mxu0 0.0
    %2752 = vmatprep.subr.mxu0 0.0
    %2753 = vmatpush1.msra.mxu0 0.0
    %2754 = vmatprep.subr.mxu0 0.0
    %2755 = vmatpush1.msra.mxu0 %v2116
    %2756 = vmatprep.subr.mxu0 0.0
    %2757 = vmatpush1.msra.mxu0 %v2048
    %2758 = vmatprep.subr.mxu0 0.0
    %2759 = vmatpush2.msra.mxu0 0.0
    %2760 = vmatprep.subr.mxu0 0.0
    %2761 = vmatpush2.msra.mxu0 0.0
    %2762 = vmatprep.subr.mxu0 0.0
    %2763 = vmatpush2.msra.mxu0 0.0
    %2764 = vmatprep.subr.mxu0 0.0
    %2765 = vmatpush2.msra.mxu0 0.0
    %2766 = vmatprep.subr.mxu0 0.0
    %2767 = vmatpush2.msra.mxu0 0.0
    %2768 = vmatprep.subr.mxu0 0.0
    %2769 = vmatpush2.msra.mxu0 0.0
    %2770 = vmatprep.subr.mxu0 0.0
    %2771 = vmatpush2.msra.mxu0 0.0
    %2772 = vmatprep.subr.mxu0 0.0
    %2773 = vmatpush2.msra.mxu0 0.0
    %2774 = vmatprep.subr.mxu0 0.0
    %2775 = vmatpush2.msra.mxu0 0.0
    %2776 = vmatprep.subr.mxu0 0.0
    %2777 = vmatpush2.msra.mxu0 0.0
    %2778 = vmatprep.subr.mxu0 0.0
    %2779 = vmatpush2.msra.mxu0 0.0
    %2780 = vmatprep.subr.mxu0 0.0
    %2781 = vmatpush2.msra.mxu0 0.0
    %2782 = vmatprep.subr.mxu0 0.0
    %2783 = vmatpush2.msra.mxu0 0.0
    %2784 = vmatprep.subr.mxu0 0.0
    %2785 = vmatpush2.msra.mxu0 0.0
    %2786 = vmatprep.subr.mxu0 0.0
    %2787 = vmatpush2.msra.mxu0 0.0
    %2788 = vmatprep.subr.mxu0 0.0
    %2789 = vmatpush2.msra.mxu0 0.0
    %2790 = vmatprep.mubr.f32.mxu0 0.0
    %2791 = vmatmul.mubr.f32.gmra.mxu0 %v2721
    %v2792 = vpop.f32.mrf.mxu0
    %v2793 = vadd.f32 0.0, %v2792
    %v2794 = vpop.f32.mrf.mxu0
    %2795 = vmatprep.mubr.f32.mxu0 0.0
    %2796 = vmatmul.mubr.f32.gmra.mxu0 %v2724
    %v2797 = vpop.f32.mrf.mxu0
    %v2798 = vadd.f32 0.0, %v2797
    %v2799 = vpop.f32.mrf.mxu0
    %2800 = vdwg.mxu0
    %v2802 = vsel %vm2469, %v2556, 0
    %v2805 = vsel %vm2469, %v2557, 0
    %2807 = vmatprep.subr.mxu0 0.0
    %2808 = vmatpush1.msra.mxu0 0.0
    %2809 = vmatprep.subr.mxu0 0.0
    %2810 = vmatpush1.msra.mxu0 0.0
    %2811 = vmatprep.subr.mxu0 0.0
    %2812 = vmatpush1.msra.mxu0 0.0
    %2813 = vmatprep.subr.mxu0 0.0
    %2814 = vmatpush1.msra.mxu0 0.0
    %2815 = vmatprep.subr.mxu0 0.0
    %2816 = vmatpush1.msra.mxu0 0.0
    %2817 = vmatprep.subr.mxu0 0.0
    %2818 = vmatpush1.msra.mxu0 0.0
    %2819 = vmatprep.subr.mxu0 0.0
    %2820 = vmatpush1.msra.mxu0 0.0
    %2821 = vmatprep.subr.mxu0 0.0
    %2822 = vmatpush1.msra.mxu0 0.0
    %2823 = vmatprep.subr.mxu0 0.0
    %2824 = vmatpush1.msra.mxu0 0.0
    %2825 = vmatprep.subr.mxu0 0.0
    %2826 = vmatpush1.msra.mxu0 0.0
    %2827 = vmatprep.subr.mxu0 0.0
    %2828 = vmatpush1.msra.mxu0 0.0
    %2829 = vmatprep.subr.mxu0 0.0
    %2830 = vmatpush1.msra.mxu0 0.0
    %2831 = vmatprep.subr.mxu0 0.0
    %2832 = vmatpush1.msra.mxu0 0.0
    %2833 = vmatprep.subr.mxu0 0.0
    %2834 = vmatpush1.msra.mxu0 0.0
    %2835 = vmatprep.subr.mxu0 0.0
    %2836 = vmatpush1.msra.mxu0 %v2117
    %2837 = vmatprep.subr.mxu0 0.0
    %2838 = vmatpush1.msra.mxu0 %v2049
    %2839 = vmatprep.subr.mxu0 0.0
    %2840 = vmatpush2.msra.mxu0 0.0
    %2841 = vmatprep.subr.mxu0 0.0
    %2842 = vmatpush2.msra.mxu0 0.0
    %2843 = vmatprep.subr.mxu0 0.0
    %2844 = vmatpush2.msra.mxu0 0.0
    %2845 = vmatprep.subr.mxu0 0.0
    %2846 = vmatpush2.msra.mxu0 0.0
    %2847 = vmatprep.subr.mxu0 0.0
    %2848 = vmatpush2.msra.mxu0 0.0
    %2849 = vmatprep.subr.mxu0 0.0
    %2850 = vmatpush2.msra.mxu0 0.0
    %2851 = vmatprep.subr.mxu0 0.0
    %2852 = vmatpush2.msra.mxu0 0.0
    %2853 = vmatprep.subr.mxu0 0.0
    %2854 = vmatpush2.msra.mxu0 0.0
    %2855 = vmatprep.subr.mxu0 0.0
    %2856 = vmatpush2.msra.mxu0 0.0
    %2857 = vmatprep.subr.mxu0 0.0
    %2858 = vmatpush2.msra.mxu0 0.0
    %2859 = vmatprep.subr.mxu0 0.0
    %2860 = vmatpush2.msra.mxu0 0.0
    %2861 = vmatprep.subr.mxu0 0.0
    %2862 = vmatpush2.msra.mxu0 0.0
    %2863 = vmatprep.subr.mxu0 0.0
    %2864 = vmatpush2.msra.mxu0 0.0
    %2865 = vmatprep.subr.mxu0 0.0
    %2866 = vmatpush2.msra.mxu0 0.0
    %2867 = vmatprep.subr.mxu0 0.0
    %2868 = vmatpush2.msra.mxu0 0.0
    %2869 = vmatprep.subr.mxu0 0.0
    %2870 = vmatpush2.msra.mxu0 0.0
    %2871 = vmatprep.mubr.f32.mxu0 0.0
    %2872 = vmatmul.mubr.f32.gmra.mxu0 %v2802
    %v2873 = vpop.f32.mrf.mxu0
    %v2874 = vadd.f32 0.0, %v2873
    %v2875 = vpop.f32.mrf.mxu0
    %2876 = vmatprep.mubr.f32.mxu0 0.0
    %2877 = vmatmul.mubr.f32.gmra.mxu0 %v2805
    %v2878 = vpop.f32.mrf.mxu0
    %v2879 = vadd.f32 0.0, %v2878
    %v2880 = vpop.f32.mrf.mxu0
    %2881 = vdwg.mxu0
    %v2882 = vcombine.low %v2631, %v2793
    %v2883 = vcombine.high %v2631, %v2793
    %v2885 = vunpack.c.l.s4 1983009808
    %v2886 = vunpack.c.0.s8 %v2885
    %v2887 = vlaneseq
    %v2888 = vshrl.u32 %v2887, 7
    %v2889 = vsub.s32 %v2886, %v2888
    %v2890 = vrot.slane %v2882, %v2889
    %v2892 = vunpack.c.l.s4 1983009808
    %v2893 = vunpack.c.0.s8 %v2892
    %v2894 = vlaneseq
    %v2895 = vshrl.u32 %v2894, 7
    %v2896 = vsub.s32 %v2893, %v2895
    %v2897 = vrot.slane %v2883, %v2896
    %v2898 = vcombine.low %v2712, %v2874
    %v2899 = vcombine.high %v2712, %v2874
    %v2901 = vunpack.c.l.s4 1983009808
    %v2902 = vunpack.c.0.s8 %v2901
    %v2903 = vlaneseq
    %v2904 = vshrl.u32 %v2903, 7
    %v2905 = vsub.s32 %v2902, %v2904
    %v2906 = vrot.slane %v2898, %v2905
    %v2908 = vunpack.c.l.s4 1983009808
    %v2909 = vunpack.c.0.s8 %v2908
    %v2910 = vlaneseq
    %v2911 = vshrl.u32 %v2910, 7
    %v2912 = vsub.s32 %v2909, %v2911
    %v2913 = vrot.slane %v2899, %v2912
    %v2914 = vcombine.low %v2890, %v2906
    %v2915 = vcombine.high %v2890, %v2906
    %v2917 = vunpack.c.l.s4 1934713408
    %v2918 = vunpack.c.0.s8 %v2917
    %v2919 = vlaneseq
    %v2920 = vshrl.u32 %v2919, 7
    %v2921 = vsub.s32 %v2918, %v2920
    %v2922 = vrot.slane %v2914, %v2921
    %v2924 = vunpack.c.l.s4 1934713408
    %v2925 = vunpack.c.0.s8 %v2924
    %v2926 = vlaneseq
    %v2927 = vshrl.u32 %v2926, 7
    %v2928 = vsub.s32 %v2925, %v2927
    %v2929 = vrot.slane %v2915, %v2928
    %v2930 = vcombine.low %v2897, %v2913
    %v2931 = vcombine.high %v2897, %v2913
    %v2933 = vunpack.c.l.s4 1934713408
    %v2934 = vunpack.c.0.s8 %v2933
    %v2935 = vlaneseq
    %v2936 = vshrl.u32 %v2935, 7
    %v2937 = vsub.s32 %v2934, %v2936
    %v2938 = vrot.slane %v2930, %v2937
    %v2940 = vunpack.c.l.s4 1934713408
    %v2941 = vunpack.c.0.s8 %v2940
    %v2942 = vlaneseq
    %v2943 = vshrl.u32 %v2942, 7
    %v2944 = vsub.s32 %v2941, %v2943
    %v2945 = vrot.slane %v2931, %v2944
    %v2946 = vcombine.high %v2922, 0.0
    %v2947 = vcombine.high %v2929, 0.0
    %v2948 = vcombine.high %v2938, 0.0
    %v2949 = vcombine.high %v2945, 0.0
    %v2950 = vcombine.low %v2636, %v2798
    %v2951 = vcombine.high %v2636, %v2798
    %v2953 = vunpack.c.l.s4 1983009808
    %v2954 = vunpack.c.0.s8 %v2953
    %v2955 = vlaneseq
    %v2956 = vshrl.u32 %v2955, 7
    %v2957 = vsub.s32 %v2954, %v2956
    %v2958 = vrot.slane %v2950, %v2957
    %v2960 = vunpack.c.l.s4 1983009808
    %v2961 = vunpack.c.0.s8 %v2960
    %v2962 = vlaneseq
    %v2963 = vshrl.u32 %v2962, 7
    %v2964 = vsub.s32 %v2961, %v2963
    %v2965 = vrot.slane %v2951, %v2964
    %v2966 = vcombine.low %v2717, %v2879
    %v2967 = vcombine.high %v2717, %v2879
    %v2969 = vunpack.c.l.s4 1983009808
    %v2970 = vunpack.c.0.s8 %v2969
    %v2971 = vlaneseq
    %v2972 = vshrl.u32 %v2971, 7
    %v2973 = vsub.s32 %v2970, %v2972
    %v2974 = vrot.slane %v2966, %v2973
    %v2976 = vunpack.c.l.s4 1983009808
    %v2977 = vunpack.c.0.s8 %v2976
    %v2978 = vlaneseq
    %v2979 = vshrl.u32 %v2978, 7
    %v2980 = vsub.s32 %v2977, %v2979
    %v2981 = vrot.slane %v2967, %v2980
    %v2982 = vcombine.low %v2958, %v2974
    %v2983 = vcombine.high %v2958, %v2974
    %v2985 = vunpack.c.l.s4 1934713408
    %v2986 = vunpack.c.0.s8 %v2985
    %v2987 = vlaneseq
    %v2988 = vshrl.u32 %v2987, 7
    %v2989 = vsub.s32 %v2986, %v2988
    %v2990 = vrot.slane %v2982, %v2989
    %v2992 = vunpack.c.l.s4 1934713408
    %v2993 = vunpack.c.0.s8 %v2992
    %v2994 = vlaneseq
    %v2995 = vshrl.u32 %v2994, 7
    %v2996 = vsub.s32 %v2993, %v2995
    %v2997 = vrot.slane %v2983, %v2996
    %v2998 = vcombine.low %v2965, %v2981
    %v2999 = vcombine.high %v2965, %v2981
    %v3001 = vunpack.c.l.s4 1934713408
    %v3002 = vunpack.c.0.s8 %v3001
    %v3003 = vlaneseq
    %v3004 = vshrl.u32 %v3003, 7
    %v3005 = vsub.s32 %v3002, %v3004
    %v3006 = vrot.slane %v2998, %v3005
    %v3008 = vunpack.c.l.s4 1934713408
    %v3009 = vunpack.c.0.s8 %v3008
    %v3010 = vlaneseq
    %v3011 = vshrl.u32 %v3010, 7
    %v3012 = vsub.s32 %v3009, %v3011
    %v3013 = vrot.slane %v2999, %v3012
    %v3014 = vcombine.high %v2990, 0.0
    %v3015 = vcombine.high %v2997, 0.0
    %v3016 = vcombine.high %v3006, 0.0
    %v3017 = vcombine.high %v3013, 0.0
    %v3018 = vcombine.low %v2922, %v2929
    %v3020 = vunpack.c.l.s4 1983009808
    %v3021 = vunpack.c.0.s8 %v3020
    %v3022 = vlaneseq
    %v3023 = vshrl.u32 %v3022, 7
    %v3024 = vsub.s32 %v3021, %v3023
    %v3025 = vrot.slane %v3018, %v3024
    %v3026 = vcombine.low %v2946, %v2947
    %v3028 = vunpack.c.l.s4 1983009808
    %v3029 = vunpack.c.0.s8 %v3028
    %v3030 = vlaneseq
    %v3031 = vshrl.u32 %v3030, 7
    %v3032 = vsub.s32 %v3029, %v3031
    %v3033 = vrot.slane %v3026, %v3032
    %v3034 = vcombine.low %v2938, %v2945
    %v3036 = vunpack.c.l.s4 1983009808
    %v3037 = vunpack.c.0.s8 %v3036
    %v3038 = vlaneseq
    %v3039 = vshrl.u32 %v3038, 7
    %v3040 = vsub.s32 %v3037, %v3039
    %v3041 = vrot.slane %v3034, %v3040
    %v3042 = vcombine.low %v2948, %v2949
    %v3044 = vunpack.c.l.s4 1983009808
    %v3045 = vunpack.c.0.s8 %v3044
    %v3046 = vlaneseq
    %v3047 = vshrl.u32 %v3046, 7
    %v3048 = vsub.s32 %v3045, %v3047
    %v3049 = vrot.slane %v3042, %v3048
    %v3050 = vcombine.low %v3025, %v3033
    %v3051 = vcombine.high %v3025, %v3033
    %v3053 = vunpack.c.l.s4 1934713408
    %v3054 = vunpack.c.0.s8 %v3053
    %v3055 = vlaneseq
    %v3056 = vshrl.u32 %v3055, 7
    %v3057 = vsub.s32 %v3054, %v3056
    %v3058 = vrot.slane %v3050, %v3057
    %v3060 = vunpack.c.l.s4 1934713408
    %v3061 = vunpack.c.0.s8 %v3060
    %v3062 = vlaneseq
    %v3063 = vshrl.u32 %v3062, 7
    %v3064 = vsub.s32 %v3061, %v3063
    %v3065 = vrot.slane %v3051, %v3064
    %v3066 = vcombine.low %v3041, %v3049
    %v3067 = vcombine.high %v3041, %v3049
    %v3069 = vunpack.c.l.s4 1934713408
    %v3070 = vunpack.c.0.s8 %v3069
    %v3071 = vlaneseq
    %v3072 = vshrl.u32 %v3071, 7
    %v3073 = vsub.s32 %v3070, %v3072
    %v3074 = vrot.slane %v3066, %v3073
    %v3076 = vunpack.c.l.s4 1934713408
    %v3077 = vunpack.c.0.s8 %v3076
    %v3078 = vlaneseq
    %v3079 = vshrl.u32 %v3078, 7
    %v3080 = vsub.s32 %v3077, %v3079
    %v3081 = vrot.slane %v3067, %v3080
    %v3082 = vcombine.low %v3058, %v3074
    %v3083 = vcombine.high %v3058, %v3074
    %v3084 = vcombine.low %v3065, %v3081
    %v3085 = vcombine.high %v3065, %v3081
    %v3086 = vcombine.low %v2990, %v2997
    %v3088 = vunpack.c.l.s4 1983009808
    %v3089 = vunpack.c.0.s8 %v3088
    %v3090 = vlaneseq
    %v3091 = vshrl.u32 %v3090, 7
    %v3092 = vsub.s32 %v3089, %v3091
    %v3093 = vrot.slane %v3086, %v3092
    %v3094 = vcombine.low %v3014, %v3015
    %v3096 = vunpack.c.l.s4 1983009808
    %v3097 = vunpack.c.0.s8 %v3096
    %v3098 = vlaneseq
    %v3099 = vshrl.u32 %v3098, 7
    %v3100 = vsub.s32 %v3097, %v3099
    %v3101 = vrot.slane %v3094, %v3100
    %v3102 = vcombine.low %v3006, %v3013
    %v3104 = vunpack.c.l.s4 1983009808
    %v3105 = vunpack.c.0.s8 %v3104
    %v3106 = vlaneseq
    %v3107 = vshrl.u32 %v3106, 7
    %v3108 = vsub.s32 %v3105, %v3107
    %v3109 = vrot.slane %v3102, %v3108
    %v3110 = vcombine.low %v3016, %v3017
    %v3112 = vunpack.c.l.s4 1983009808
    %v3113 = vunpack.c.0.s8 %v3112
    %v3114 = vlaneseq
    %v3115 = vshrl.u32 %v3114, 7
    %v3116 = vsub.s32 %v3113, %v3115
    %v3117 = vrot.slane %v3110, %v3116
    %v3118 = vcombine.low %v3093, %v3101
    %v3119 = vcombine.high %v3093, %v3101
    %v3121 = vunpack.c.l.s4 1934713408
    %v3122 = vunpack.c.0.s8 %v3121
    %v3123 = vlaneseq
    %v3124 = vshrl.u32 %v3123, 7
    %v3125 = vsub.s32 %v3122, %v3124
    %v3126 = vrot.slane %v3118, %v3125
    %v3128 = vunpack.c.l.s4 1934713408
    %v3129 = vunpack.c.0.s8 %v3128
    %v3130 = vlaneseq
    %v3131 = vshrl.u32 %v3130, 7
    %v3132 = vsub.s32 %v3129, %v3131
    %v3133 = vrot.slane %v3119, %v3132
    %v3134 = vcombine.low %v3109, %v3117
    %v3135 = vcombine.high %v3109, %v3117
    %v3137 = vunpack.c.l.s4 1934713408
    %v3138 = vunpack.c.0.s8 %v3137
    %v3139 = vlaneseq
    %v3140 = vshrl.u32 %v3139, 7
    %v3141 = vsub.s32 %v3138, %v3140
    %v3142 = vrot.slane %v3134, %v3141
    %v3144 = vunpack.c.l.s4 1934713408
    %v3145 = vunpack.c.0.s8 %v3144
    %v3146 = vlaneseq
    %v3147 = vshrl.u32 %v3146, 7
    %v3148 = vsub.s32 %v3145, %v3147
    %v3149 = vrot.slane %v3135, %v3148
    %v3150 = vcombine.low %v3126, %v3142
    %v3151 = vcombine.high %v3126, %v3142
    %v3152 = vcombine.low %v3133, %v3149
    %v3153 = vcombine.high %v3133, %v3149
    %3156 = vrot.lane.b32.xlu0 %v3083, 8
    %v3157 = vpop.permute.xlu0 %3156
    %3158 = vrot.lane.b32.xlu0 %v3151, 8
    %v3159 = vpop.permute.xlu0 %3158
    %3164 = vrot.lane.b32.xlu0 %v3084, 16
    %v3165 = vpop.permute.xlu0 %3164
    %3166 = vrot.lane.b32.xlu0 %v3152, 16
    %v3167 = vpop.permute.xlu0 %3166
    %3172 = vrot.lane.b32.xlu0 %v3085, 24
    %v3173 = vpop.permute.xlu0 %3172
    %3174 = vrot.lane.b32.xlu0 %v3153, 24
    %v3175 = vpop.permute.xlu0 %3174
    %v3178 = vsel %vm2120, %v3082, %v3157
    %v3179 = vsel %vm2120, %v3150, %v3159
    %v3180 = vsel %vm2469, %v3178, %v3165
    %v3181 = vsel %vm2469, %v3179, %v3167
    %vm3182 = vcmask 195584
    %v3183 = vsel %vm3182, %v3180, %v3173
    %v3184 = vsel %vm3182, %v3181, %v3175
    %v3185 = vld [vmem:[%s2] sm:$0xff]
    %v3186 = vld [vmem:[%s2 + $0x8] sm:$0xff]
    %v3187 = vld [vmem:[%s2 + $0x10] sm:$0xff]
    %v3188 = vld [vmem:[%s2 + $0x18] sm:$0xff]
    %v3190 = vsel %vm67, %v3183, 0
    %v3193 = vsel %vm67, %v3184, 0
    %3195 = vmatprep.subr.mxu0 0.0
    %3196 = vmatpush1.msra.mxu0 0.0
    %3197 = vmatprep.subr.mxu0 0.0
    %3198 = vmatpush1.msra.mxu0 0.0
    %3199 = vmatprep.subr.mxu0 0.0
    %3200 = vmatpush1.msra.mxu0 0.0
    %3201 = vmatprep.subr.mxu0 0.0
    %3202 = vmatpush1.msra.mxu0 0.0
    %3203 = vmatprep.subr.mxu0 0.0
    %3204 = vmatpush1.msra.mxu0 0.0
    %3205 = vmatprep.subr.mxu0 0.0
    %3206 = vmatpush1.msra.mxu0 0.0
    %3207 = vmatprep.subr.mxu0 0.0
    %3208 = vmatpush1.msra.mxu0 0.0
    %3209 = vmatprep.subr.mxu0 0.0
    %3210 = vmatpush1.msra.mxu0 0.0
    %3211 = vmatprep.subr.mxu0 0.0
    %3212 = vmatpush1.msra.mxu0 0.0
    %3213 = vmatprep.subr.mxu0 0.0
    %3214 = vmatpush1.msra.mxu0 0.0
    %3215 = vmatprep.subr.mxu0 0.0
    %3216 = vmatpush1.msra.mxu0 0.0
    %3217 = vmatprep.subr.mxu0 0.0
    %3218 = vmatpush1.msra.mxu0 0.0
    %3219 = vmatprep.subr.mxu0 0.0
    %3220 = vmatpush1.msra.mxu0 %v3188
    %3221 = vmatprep.subr.mxu0 0.0
    %3222 = vmatpush1.msra.mxu0 %v3187
    %3223 = vmatprep.subr.mxu0 0.0
    %3224 = vmatpush1.msra.mxu0 %v3186
    %3225 = vmatprep.subr.mxu0 0.0
    %3226 = vmatpush1.msra.mxu0 %v3185
    %3227 = vmatprep.subr.mxu0 0.0
    %3228 = vmatpush2.msra.mxu0 0.0
    %3229 = vmatprep.subr.mxu0 0.0
    %3230 = vmatpush2.msra.mxu0 0.0
    %3231 = vmatprep.subr.mxu0 0.0
    %3232 = vmatpush2.msra.mxu0 0.0
    %3233 = vmatprep.subr.mxu0 0.0
    %3234 = vmatpush2.msra.mxu0 0.0
    %3235 = vmatprep.subr.mxu0 0.0
    %3236 = vmatpush2.msra.mxu0 0.0
    %3237 = vmatprep.subr.mxu0 0.0
    %3238 = vmatpush2.msra.mxu0 0.0
    %3239 = vmatprep.subr.mxu0 0.0
    %3240 = vmatpush2.msra.mxu0 0.0
    %3241 = vmatprep.subr.mxu0 0.0
    %3242 = vmatpush2.msra.mxu0 0.0
    %3243 = vmatprep.subr.mxu0 0.0
    %3244 = vmatpush2.msra.mxu0 0.0
    %3245 = vmatprep.subr.mxu0 0.0
    %3246 = vmatpush2.msra.mxu0 0.0
    %3247 = vmatprep.subr.mxu0 0.0
    %3248 = vmatpush2.msra.mxu0 0.0
    %3249 = vmatprep.subr.mxu0 0.0
    %3250 = vmatpush2.msra.mxu0 0.0
    %3251 = vmatprep.subr.mxu0 0.0
    %3252 = vmatpush2.msra.mxu0 0.0
    %3253 = vmatprep.subr.mxu0 0.0
    %3254 = vmatpush2.msra.mxu0 0.0
    %3255 = vmatprep.subr.mxu0 0.0
    %3256 = vmatpush2.msra.mxu0 0.0
    %3257 = vmatprep.subr.mxu0 0.0
    %3258 = vmatpush2.msra.mxu0 0.0
    %3259 = vmatprep.mubr.f32.mxu0 0.0
    %3260 = vmatmul.mubr.f32.gmra.mxu0 %v3190
    %v3261 = vpop.f32.mrf.mxu0
    %v3262 = vadd.f32 0.0, %v3261
    %v3263 = vpop.f32.mrf.mxu0
    %3264 = vmatprep.mubr.f32.mxu0 0.0
    %3265 = vmatmul.mubr.f32.gmra.mxu0 %v3193
    %v3266 = vpop.f32.mrf.mxu0
    %v3267 = vadd.f32 0.0, %v3266
    %v3268 = vpop.f32.mrf.mxu0
    %3269 = vdwg.mxu0
    %v3270 = vld [vmem:[%s8] sm:$0xff]
    %v3271 = vld [vmem:[%s8 + $0x8] sm:$0xff]
    %3273 = vset.pattern.permute.xlu0 0
    %3274 = vperm.xlu0 %3273, %v3270
    %v3275 = vpop.permute.xlu0 %3274
    %3278 = vset.pattern.permute.xlu0 0
    %3279 = vperm.xlu0 %3278, %v3271
    %v3280 = vpop.permute.xlu0 %3279
    %v3282 = vmul.f32 %v3262, %v3275
    %v3283 = vmul.f32 %v3267, %v3280
    %3284 = vst.msk [vmem:[#allocation7] sm:$0xff] %vm67, %v3282
    %3285 = vst.msk [vmem:[#allocation7 + $0x8] sm:$0xff] %vm67, %v3283
    // Predicated region
    $region46: #{tpu_custom_call.1} parent=1 // pred_check
      _
    $region47: #{tpu_custom_call.1} parent=1 // pred_check_branch
      %3287 = sbr.rel (0) target = $region49
    $region48: #{tpu_custom_call.1} parent=1 // pred_region
      %s3289 = ssub.s32 256, 256
      %3290 = vsyncadd [#allocation4], %s3289
      %s3291 = sshll.u32 [#allocation7], 4
      %s3292 = int_to_ptr.vmem [resolvable:$true] %s3291
      %3297 = dma.vmem_to_hbm [thread:$0]  %s3292, 256, %s9, [#allocation4], 128, 128, 8
    $region49: #{tpu_custom_call.1} parent=1 // pred_fallthru
      _
    // Predicated region
    $region50: #{tpu_custom_call.1} parent=1 // pred_check
      _
    $region51: #{tpu_custom_call.1} parent=1 // pred_check_branch
      %3299 = sbr.rel (0) target = $region53
    $region52: #{tpu_custom_call.1} parent=1 // pred_region
      %3300 = dma.done [#allocation4], 256
    $region53: #{tpu_custom_call.1} parent=1 // pred_fallthru
      _
    %3301 = vsyncpa [#allocation3], 1
    %3302 = vsyncpa [#allocation6], 1
    %3303 = vsyncpa [#allocation4], 1

</llo_original>
